<compile_context>
chip_gen: v6e
topology: v6e:2x2x1
jax: 0.10.0
libtpu: 0.0.40
codegen_flags: <defaults>
</compile_context>

<pallas_src>
import functools

import jax
import jax.numpy as jnp
from jax.experimental import pallas as pl
from jax.experimental.pallas import tpu as pltpu


def _round_up(v, m):
    return ((v + m - 1) // m) * m


def _vmem_budgets():
    """Per-generation VMEM budgets (v5e/v6e: 128 MiB phys, v7x: 64 MiB phys)."""
    cap = 64 * 1024 * 1024                      # conservative fallback (v7x physical)
    try:
        info = pltpu.get_tpu_info()
        cap = int(getattr(info, "vmem_capacity_bytes", cap))
    except Exception:
        pass
    cap = max(cap, 32 * 1024 * 1024)
    limit = min(int(cap * 0.55), 64 * 1024 * 1024)     # scoped limit we request
    budget = min(int(cap * 0.30), 24 * 1024 * 1024)    # target per-step working set
    return limit, budget


_VMEM_LIMIT, _TILE_BUDGET = _vmem_budgets()


# --------------------------------------------------------------------------
# Pallas kernel 1: matmul with fused bias + activation [+ residual]  (im2col path)
# --------------------------------------------------------------------------
def _matmul_bias_act_kernel(a_ref, b_ref, c_ref, *rest, act, has_res):
    o_ref = rest[-1]
    acc = jnp.dot(a_ref[...], b_ref[...], preferred_element_type=jnp.float32)
    y = acc + c_ref[...]
    if has_res:
        y = y + rest[0][...].astype(jnp.float32)
    if act == "relu":
        y = jnp.maximum(y, 0.0)
    elif act == "sigmoid":
        y = jax.nn.sigmoid(y)
    o_ref[...] = y.astype(o_ref.dtype)


def matmul_bias_act(a, b, bias, act="none", residual=None, out_dtype=jnp.bfloat16):
    """a: (M, K), b: (K, N), bias: (N,) -> act(a@b + bias [+ res]).  bf16 MXU, f32 epilogue."""
    M, K = a.shape
    N = b.shape[1]
    tn = 256 if (N > 256 and N % 256 == 0) else N

    # adaptive row tile: largest candidate whose double-buffered working set fits budget
    Mp16 = _round_up(M, 16)
    tm = 16
    for cand in (1024, 512, 256, 128, 64, 32, 16):
        t = min(cand, Mp16)
        ws = (4 * (t * K + K * tn)                                  # dbuf bf16 A + B
              + 4 * t * tn * (2 if residual is not None else 1)     # dbuf bf16 out [+res]
              + 4 * t * tn + 8 * tn)                                # f32 acc + bias
        if ws <= _TILE_BUDGET:
            tm = t
            break
    Mp = _round_up(M, tm)

    a = a.astype(jnp.bfloat16)
    b = b.astype(jnp.bfloat16)
    if Mp != M:
        a = jnp.pad(a, ((0, Mp - M), (0, 0)))
    bias2 = bias.reshape(1, N).astype(jnp.float32)

    in_specs = [
        pl.BlockSpec((tm, K), lambda i, j: (i, 0)),
        pl.BlockSpec((K, tn), lambda i, j: (0, j)),
        pl.BlockSpec((1, tn), lambda i, j: (0, j)),
    ]
    args = [a, b, bias2]
    if residual is not None:
        r = residual.astype(jnp.bfloat16)
        if Mp != M:
            r = jnp.pad(r, ((0, Mp - M), (0, 0)))
        in_specs.append(pl.BlockSpec((tm, tn), lambda i, j: (i, j)))
        args.append(r)

    out = pl.pallas_call(
        functools.partial(_matmul_bias_act_kernel, act=act,
                          has_res=residual is not None),
        out_shape=jax.ShapeDtypeStruct((Mp, N), out_dtype),
        grid=(Mp // tm, N // tn),
        in_specs=in_specs,
        out_specs=pl.BlockSpec((tm, tn), lambda i, j: (i, j)),
        compiler_params=pltpu.CompilerParams(
            dimension_semantics=("parallel", "parallel"),
            vmem_limit_bytes=_VMEM_LIMIT),
    )(*args)
    return out[:M]


# --------------------------------------------------------------------------
# Pallas kernel 2: direct 3x3 stride-1 conv (halo DMA + in-kernel 9-tap reduction)
# --------------------------------------------------------------------------
def _conv3x3_s1_kernel(x_ref, w_ref, b_ref, *rest, th, Wo, Cin, Cout, act, has_res):
    if has_res:
        r_ref, o_ref, buf_ref, sem = rest
    else:
        o_ref, buf_ref, sem = rest
        r_ref = None

    b = pl.program_id(0)
    h0 = pl.program_id(1) * th
    # one halo'd activation block per grid step: rows [h0, h0+th+2) of the padded image
    cp = pltpu.make_async_copy(x_ref.at[b, pl.ds(h0, th + 2)], buf_ref, sem)
    cp.start()
    cp.wait()

    acc = jnp.zeros((th * Wo, Cout), jnp.float32)
    for i in range(3):
        for j in range(3):
            tap = buf_ref[i:i + th, j:j + Wo, :].reshape(th * Wo, Cin)
            acc = acc + jnp.dot(tap, w_ref[i * 3 + j],
                                preferred_element_type=jnp.float32)

    y = acc + b_ref[...]
    if has_res:
        y = y + r_ref[0].astype(jnp.float32)
    if act == "relu":
        y = jnp.maximum(y, 0.0)
    elif act == "sigmoid":
        y = jax.nn.sigmoid(y)
    o_ref[0] = y.astype(o_ref.dtype)


def conv3x3_s1_direct(x, w, bias, act="relu", residual=None):
    """Direct 3x3 stride-1 pad-1 conv.  Returns None if the shape is not eligible
    (falls back to the im2col path)."""
    B, H, W, Cin = x.shape
    Cout = w.shape[-1]
    Ho, Wo = H, W
    if Wo % 8 != 0:
        return None                                   # keep the in-kernel reshape layout-free
    Hp, Wp = H + 2, W + 2
    w_bytes = 9 * Cin * Cout * 2

    # output-row tile: largest divisor of Ho whose VMEM working set fits the budget
    th = None
    for cand in range(Ho, 0, -1):
        if Ho % cand:
            continue
        ws = ((cand + 2) * Wp * Cin * 2                       # halo buffer
              + w_bytes                                       # resident weights
              + 2 * cand * Wo * Cout * 2                      # dbuf output
              + (2 * cand * Wo * Cout * 2 if residual is not None else 0)
              + cand * Wo * Cout * 4                          # f32 accumulator
              + Cout * 8)
        if ws <= _TILE_BUDGET:
            th = cand
            break
    if th is None:
        return None

    xp = jnp.pad(x.astype(jnp.bfloat16), ((0, 0), (1, 1), (1, 1), (0, 0)))
    w9 = w.astype(jnp.bfloat16).reshape(9, Cin, Cout)
    bias2 = bias.reshape(1, Cout).astype(jnp.float32)

    in_specs = [
        pl.BlockSpec(memory_space=pl.ANY),                       # padded input stays in HBM
        pl.BlockSpec((9, Cin, Cout), lambda b, h: (0, 0, 0)),    # weights resident in VMEM
        pl.BlockSpec((1, Cout), lambda b, h: (0, 0)),
    ]
    args = [xp, w9, bias2]
    if residual is not None:
        r = residual.astype(jnp.bfloat16).reshape(B, Ho * Wo, Cout)
        in_specs.append(pl.BlockSpec((1, th * Wo, Cout), lambda b, h: (b, h, 0)))
        args.append(r)

    out = pl.pallas_call(
        functools.partial(_conv3x3_s1_kernel, th=th, Wo=Wo, Cin=Cin, Cout=Cout,
                          act=act, has_res=residual is not None),
        out_shape=jax.ShapeDtypeStruct((B, Ho * Wo, Cout), jnp.bfloat16),
        grid=(B, Ho // th),
        in_specs=in_specs,
        out_specs=pl.BlockSpec((1, th * Wo, Cout), lambda b, h: (b, h, 0)),
        scratch_shapes=[pltpu.VMEM((th + 2, Wp, Cin), jnp.bfloat16),
                        pltpu.SemaphoreType.DMA(())],
        compiler_params=pltpu.CompilerParams(
            dimension_semantics=("parallel", "parallel"),
            vmem_limit_bytes=_VMEM_LIMIT),
    )(*args)
    return out.reshape(B, Ho, Wo, Cout)


# --------------------------------------------------------------------------
# Pallas kernel 3: ARM fuse  out = feat * atten + other  (large slabs only)
# --------------------------------------------------------------------------
def _arm_fuse_kernel(f_ref, a_ref, g_ref, o_ref):
    y = (f_ref[...].astype(jnp.float32) * a_ref[...].astype(jnp.float32)
         + g_ref[...].astype(jnp.float32))
    o_ref[...] = y.astype(o_ref.dtype)


def arm_fuse(feat, atten, other):
    """feat: (B,H,W,C); atten: (B,1,1,C); other: (B,H,W,C) or (B,1,1,C)."""
    B, H, W, C = feat.shape
    HW = H * W
    if HW < 1024:
        # tiny slab: pallas_call launch overhead would dominate -> plain jnp
        y = (feat.astype(jnp.float32) * atten.astype(jnp.float32)
             + other.astype(jnp.float32))
        return y.astype(feat.dtype)

    other_vec = (other.shape[1] == 1 and other.shape[2] == 1)
    tr = 1024
    HWp = _round_up(HW, tr)
    f = feat.reshape(B, HW, C)
    a = atten.reshape(B, 1, C)
    g = other.reshape(B, 1, C) if other_vec else other.reshape(B, HW, C)
    if HWp != HW:
        f = jnp.pad(f, ((0, 0), (0, HWp - HW), (0, 0)))
        if not other_vec:
            g = jnp.pad(g, ((0, 0), (0, HWp - HW), (0, 0)))
    g_spec = (pl.BlockSpec((1, 1, C), lambda b, i: (b, 0, 0)) if other_vec
              else pl.BlockSpec((1, tr, C), lambda b, i: (b, i, 0)))

    out = pl.pallas_call(
        _arm_fuse_kernel,
        out_shape=jax.ShapeDtypeStruct((B, HWp, C), feat.dtype),
        grid=(B, HWp // tr),
        in_specs=[pl.BlockSpec((1, tr, C), lambda b, i: (b, i, 0)),
                  pl.BlockSpec((1, 1, C), lambda b, i: (b, 0, 0)),
                  g_spec],
        out_specs=pl.BlockSpec((1, tr, C), lambda b, i: (b, i, 0)),
        compiler_params=pltpu.CompilerParams(
            dimension_semantics=("parallel", "parallel"),
            vmem_limit_bytes=_VMEM_LIMIT),
    )(f, a, g)
    return out[:, :HW].reshape(B, H, W, C)


# --------------------------------------------------------------------------
# conv dispatch + plain-JAX glue
# --------------------------------------------------------------------------
def conv_im2col(x, w, bias, stride, padding, act, residual=None):
    B, H, W, Cin = x.shape
    kh, kw, _, Cout = w.shape
    xp = (jnp.pad(x, ((0, 0), (padding, padding), (padding, padding), (0, 0)))
          if padding > 0 else x)
    Ho = (H + 2 * padding - kh) // stride + 1
    Wo = (W + 2 * padding - kw) // stride + 1
    cols = []
    for i in range(kh):
        for j in range(kw):
            cols.append(xp[:, i:i + stride * (Ho - 1) + 1:stride,
                           j:j + stride * (Wo - 1) + 1:stride, :])
    patches = cols[0] if len(cols) == 1 else jnp.concatenate(cols, axis=-1)
    a = patches.reshape(B * Ho * Wo, kh * kw * Cin)
    bmat = w.reshape(kh * kw * Cin, Cout)       # (i, j, ci) ordering matches cols
    res2d = residual.reshape(B * Ho * Wo, Cout) if residual is not None else None
    out = matmul_bias_act(a, bmat, bias, act=act, residual=res2d)
    return out.reshape(B, Ho, Wo, Cout)


def conv_bn_act(x, w, bias, stride=1, padding=1, act="relu", residual=None):
    """Conv + folded-BN + activation (+ fused residual).  BN scale is folded into w."""
    kh, kw = w.shape[0], w.shape[1]
    if kh == 3 and kw == 3 and stride == 1 and padding == 1:
        out = conv3x3_s1_direct(x, w, bias, act=act, residual=residual)
        if out is not None:
            return out
    return conv_im2col(x, w, bias, stride, padding, act, residual)


def max_pool_3x3_s2_p1(x):
    B, H, W, C = x.shape
    neg = jnp.finfo(x.dtype).min
    xp = jnp.pad(x, ((0, 0), (1, 1), (1, 1), (0, 0)), constant_values=neg)
    Ho = (H + 2 - 3) // 2 + 1
    Wo = (W + 2 - 3) // 2 + 1
    out = None
    for i in range(3):
        for j in range(3):
            sl = xp[:, i:i + 2 * (Ho - 1) + 1:2, j:j + 2 * (Wo - 1) + 1:2, :]
            out = sl if out is None else jnp.maximum(out, sl)
    return out


def nearest_resize(x, ho, wo):
    # F.interpolate(mode='nearest'): src = floor(dst * H_in / H_out)
    B, H, W, C = x.shape
    if ho == 2 * H and wo == 2 * W:
        # exact 2x: reshape/broadcast repeat (no gather)
        y = jnp.broadcast_to(x[:, :, None, :, None, :], (B, H, 2, W, 2, C))
        return y.reshape(B, ho, wo, C)
    hi = (jnp.arange(ho) * H) // ho
    wi = (jnp.arange(wo) * W) // wo
    return x[:, hi][:, :, wi]


def small_1x1_bias_act(x, w, bias, act):
    """(B,1,1,Cin) 1x1 conv (+ folded BN) + act in plain JAX — M=B is tiny."""
    B = x.shape[0]
    cin, cout = w.shape[2], w.shape[3]
    y = jnp.dot(x.reshape(B, cin).astype(jnp.float32),
                w.reshape(cin, cout).astype(jnp.float32))
    y = y + bias
    if act == "relu":
        y = jnp.maximum(y, 0.0)
    elif act == "sigmoid":
        y = jax.nn.sigmoid(y)
    return y.reshape(B, 1, 1, cout)


# --------------------------------------------------------------------------
# deterministic parameter construction (BN scale folded into weights)
# --------------------------------------------------------------------------
def _kaiming(key, kh, kw, cin, cout):
    fan_in = kh * kw * cin
    std = (1.0 / fan_in) ** 0.5        # kaiming_normal_ with a=1
    return std * jax.random.normal(key, (kh, kw, cin, cout), jnp.float32)


def _bn_fold(key, c, eps=1e-5):
    k1, k2 = jax.random.split(key)
    gamma = 1.0 + 0.1 * jax.random.normal(k1, (c,), jnp.float32)
    beta = 0.1 * jax.random.normal(k2, (c,), jnp.float32)
    mean = jnp.zeros((c,), jnp.float32)
    var = jnp.ones((c,), jnp.float32)
    scale = gamma / jnp.sqrt(var + eps)
    bias = beta - mean * scale
    return scale, bias


def make_convbn(key, cin, cout, ks):
    k1, k2 = jax.random.split(key)
    w = _kaiming(k1, ks, ks, cin, cout)
    scale, bias = _bn_fold(k2, cout)
    w = (w * scale.reshape(1, 1, 1, cout)).astype(jnp.bfloat16)   # fold BN scale into w
    return {"w": w, "bias": bias}


def make_basic_block(key, cin, cout, stride):
    k1, k2, k3 = jax.random.split(key, 3)
    blk = {"conv1": make_convbn(k1, cin, cout, 3),
           "conv2": make_convbn(k2, cout, cout, 3),
           "stride": stride,
           "down": None}
    if cin != cout or stride != 1:
        blk["down"] = make_convbn(k3, cin, cout, 1)
    return blk


def make_layer(key, cin, cout, bnum, stride):
    keys = jax.random.split(key, bnum)
    layers = [make_basic_block(keys[0], cin, cout, stride)]
    for i in range(1, bnum):
        layers.append(make_basic_block(keys[i], cout, cout, 1))
    return layers


def init_context_path(key):
    ks = jax.random.split(key, 12)
    resnet = {
        "conv1": make_convbn(ks[0], 3, 64, 7),
        "layer1": make_layer(ks[1], 64, 64, 2, 1),
        "layer2": make_layer(ks[2], 64, 128, 2, 2),
        "layer3": make_layer(ks[3], 128, 256, 2, 2),
        "layer4": make_layer(ks[4], 256, 512, 2, 2),
    }
    return {
        "resnet": resnet,
        "arm16": {"conv": make_convbn(ks[5], 256, 128, 3),
                  "atten": make_convbn(ks[6], 128, 128, 1)},
        "arm32": {"conv": make_convbn(ks[7], 512, 128, 3),
                  "atten": make_convbn(ks[8], 128, 128, 1)},
        "conv_head32": make_convbn(ks[9], 128, 128, 3),
        "conv_head16": make_convbn(ks[10], 128, 128, 3),
        "conv_avg": make_convbn(ks[11], 512, 128, 1),
    }


# --------------------------------------------------------------------------
# forward passes
# --------------------------------------------------------------------------
def basic_block_fwd(p, x):
    s = p["stride"]
    r = conv_bn_act(x, p["conv1"]["w"], p["conv1"]["bias"],
                    stride=s, padding=1, act="relu")
    if p["down"] is not None:
        sc = conv_bn_act(x, p["down"]["w"], p["down"]["bias"],
                         stride=s, padding=0, act="none")
    else:
        sc = x
    # shortcut add + relu fused into conv2's epilogue (no extra HBM pass)
    return conv_bn_act(r, p["conv2"]["w"], p["conv2"]["bias"],
                       stride=1, padding=1, act="relu", residual=sc)


def resnet18_fwd(p, x):
    x = conv_bn_act(x, p["conv1"]["w"], p["conv1"]["bias"],
                    stride=2, padding=3, act="relu")
    x = max_pool_3x3_s2_p1(x)
    for blk in p["layer1"]:
        x = basic_block_fwd(blk, x)
    for blk in p["layer2"]:
        x = basic_block_fwd(blk, x)
    feat8 = x
    for blk in p["layer3"]:
        x = basic_block_fwd(blk, x)
    feat16 = x
    for blk in p["layer4"]:
        x = basic_block_fwd(blk, x)
    feat32 = x
    return feat8, feat16, feat32


def arm_fwd(p, x):
    """AttentionRefinementModule: returns (feat, atten) so the caller fuses
    out = feat * atten + other in a single pass."""
    feat = conv_bn_act(x, p["conv"]["w"], p["conv"]["bias"],
                       stride=1, padding=1, act="relu")
    avg = jnp.mean(feat.astype(jnp.float32), axis=(1, 2), keepdims=True)
    atten = small_1x1_bias_act(avg, p["atten"]["w"], p["atten"]["bias"], act="sigmoid")
    return feat, atten


def context_path_fwd(p, x_nchw):
    x = jnp.transpose(x_nchw, (0, 2, 3, 1)).astype(jnp.bfloat16)   # NCHW -> NHWC
    feat8, feat16, feat32 = resnet18_fwd(p["resnet"], x)
    H8, W8 = feat8.shape[1:3]
    H16, W16 = feat16.shape[1:3]

    # global context: GAP(feat32) -> 1x1 ConvBNReLU; kept as (B,1,1,128), broadcast in fuse
    avg = jnp.mean(feat32.astype(jnp.float32), axis=(1, 2), keepdims=True)
    avg = small_1x1_bias_act(avg, p["conv_avg"]["w"], p["conv_avg"]["bias"], act="relu")

    # ARM32 + global context
    feat32_a, atten32 = arm_fwd(p["arm32"], feat32)
    feat32_sum = arm_fuse(feat32_a, atten32, avg)
    feat32_up = nearest_resize(feat32_sum, H16, W16)
    feat32_up = conv_bn_act(feat32_up, p["conv_head32"]["w"], p["conv_head32"]["bias"],
                            stride=1, padding=1, act="relu")

    # ARM16 + upsampled 32-branch
    feat16_a, atten16 = arm_fwd(p["arm16"], feat16)
    feat16_sum = arm_fuse(feat16_a, atten16, feat32_up)
    feat16_up = nearest_resize(feat16_sum, H8, W8)
    feat16_up = conv_bn_act(feat16_up, p["conv_head16"]["w"], p["conv_head16"]["bias"],
                            stride=1, padding=1, act="relu")

    to_nchw = lambda t: jnp.transpose(t.astype(jnp.float32), (0, 3, 1, 2))
    return to_nchw(feat8), to_nchw(feat16_up), to_nchw(feat32_up)


# --------------------------------------------------------------------------
if __name__ == "__main__":
    key = jax.random.PRNGKey(0)
    kp, kx = jax.random.split(key)
    params = init_context_path(kp)
    # NCHW input, like the PyTorch module; 64x64 keeps all strides valid.
    x = jax.random.normal(kx, (2, 3, 64, 64), jnp.float32)

    feat8, feat16_up, feat32_up = context_path_fwd(params, x)
    jax.block_until_ready((feat8, feat16_up, feat32_up))

    assert feat8.shape == (2, 128, 8, 8), feat8.shape
    assert feat16_up.shape == (2, 128, 8, 8), feat16_up.shape
    assert feat32_up.shape == (2, 128, 4, 4), feat32_up.shape
    assert all(bool(jnp.isfinite(t).all()) for t in (feat8, feat16_up, feat32_up))
    print("KERNEL_OK")
</pallas_src>

<mosaic_0001>
module attributes {stable_mosaic.version = 11 : i64} {
  func.func @_matmul_bias_act_kernel(%arg0: i32, %arg1: i32, %arg2: memref<1024x147xbf16, #tpu.memory_space<vmem>>, %arg3: memref<147x64xbf16, #tpu.memory_space<vmem>>, %arg4: memref<1x64xf32, #tpu.memory_space<vmem>>, %arg5: memref<1024x64xbf16, #tpu.memory_space<vmem>>) attributes {dimension_semantics = [#tpu.dimension_semantics<parallel>, #tpu.dimension_semantics<parallel>], iteration_bounds = array<i64: 2, 1>, scalar_prefetch = 0 : i64, scratch_operands = 0 : i64, tpu.core_type = #tpu.core_type<tc>, window_params = [{transform_indices = @transform_0, window_bounds = array<i64: 1024, 147>}, {transform_indices = @transform_1, window_bounds = array<i64: 147, 64>}, {transform_indices = @transform_2, window_bounds = array<i64: 1, 64>}, {transform_indices = @transform_3, window_bounds = array<i64: 1024, 64>}]} {
    %c0 = arith.constant 0 : index
    %c0_0 = arith.constant 0 : index
    %0 = vector.load %arg2[%c0, %c0_0] : memref<1024x147xbf16, #tpu.memory_space<vmem>>, vector<1024x147xbf16>
    %c0_1 = arith.constant 0 : index
    %c0_2 = arith.constant 0 : index
    %1 = vector.load %arg3[%c0_1, %c0_2] : memref<147x64xbf16, #tpu.memory_space<vmem>>, vector<147x64xbf16>
    %cst = arith.constant dense<0.000000e+00> : vector<1024x64xf32>
    %2 = tpu.matmul %0, %1, %cst {dimension_numbers = #tpu.dot_dimension_numbers<[1], [0], [0], [1], [0, 0, 1, 1], [], []>} : vector<1024x147xbf16>, vector<147x64xbf16>, vector<1024x64xf32> -> vector<1024x64xf32>
    %c0_3 = arith.constant 0 : index
    %c0_4 = arith.constant 0 : index
    %3 = vector.load %arg4[%c0_3, %c0_4] : memref<1x64xf32, #tpu.memory_space<vmem>>, vector<1x64xf32>
    %4 = vector.broadcast %3 : vector<1x64xf32> to vector<1024x64xf32>
    %5 = arith.addf %2, %4 : vector<1024x64xf32>
    %cst_5 = arith.constant 0.000000e+00 : f32
    %6 = vector.broadcast %cst_5 : f32 to vector<1024x64xf32>
    %7 = arith.maximumf %5, %6 : vector<1024x64xf32>
    %8 = arith.truncf %7 : vector<1024x64xf32> to vector<1024x64xbf16>
    %c0_6 = arith.constant 0 : index
    %c0_7 = arith.constant 0 : index
    %9 = vector.load %arg5[%c0_6, %c0_7] : memref<1024x64xbf16, #tpu.memory_space<vmem>>, vector<1024x64xbf16>
    tpu.vector_store %arg5[%c0_6, %c0_7], %8 {strides = array<i32>} : memref<1024x64xbf16, #tpu.memory_space<vmem>>, vector<1024x64xbf16>,
    return
  }
  func.func @transform_0(%arg0: i32, %arg1: i32) -> (i32, i32) {
    %c0_i32 = arith.constant 0 : i32
    %c0_i32_0 = arith.constant 0 : i32
    return %arg0, %c0_i32 : i32, i32
  }
  func.func @transform_1(%arg0: i32, %arg1: i32) -> (i32, i32) {
    %c0_i32 = arith.constant 0 : i32
    %c0_i32_0 = arith.constant 0 : i32
    return %c0_i32, %arg1 : i32, i32
  }
  func.func @transform_2(%arg0: i32, %arg1: i32) -> (i32, i32) {
    %c0_i32 = arith.constant 0 : i32
    %c0_i32_0 = arith.constant 0 : i32
    return %c0_i32, %arg1 : i32, i32
  }
  func.func @transform_3(%arg0: i32, %arg1: i32) -> (i32, i32) {
    %c0_i32 = arith.constant 0 : i32
    return %arg0, %arg1 : i32, i32
  }
}

</mosaic_0001>

<llo_original>
// kernel: tpu_custom_call.1
$region0: #{tpu_custom_call.1}
  #allocation0 [shape = 'u32[]', space=smem, size = 0x4, offset = 0x4, fixed_abs, tag = 'smem constant byte address 0x4 - core index']
  #allocation1 [shape = 'u32[144,128]{1,0:T(1,128)}', space=vmem, size = 0x12000, scoped, tag = 'internal scratch']
  %s0 = inlined_call_operand.vmem [shape: bf16[2048,147], index: 0, kind: input, shape index: {}]
  %s1 = inlined_call_operand.vmem [shape: bf16[147,64], index: 1, kind: input, shape index: {}]
  %s2 = inlined_call_operand.vmem [shape: f32[1,64], index: 2, kind: input, shape index: {}]
  %s3 = inlined_call_operand.vmem [shape: bf16[2048,64], index: 3, kind: output, shape index: {}]
  %s4 = sld [smem:[#allocation0]]
  $region45: #{tpu_custom_call.1} parent=0
    _
  %s6 = ssub.s32 1, %s4
  %s7 = scalar_select 0, %s6, %s4
  loop: start=0, step=1, limit=4
  $region2: #{tpu_custom_call.1} parent=0 // loop_pre_header
    _
  $region3: #{tpu_custom_call.1} parent=0 // loop_header
    %s9 = sphi 0, %s13
    %p10 = scmp.ge.s32.totalorder %s9, 4
    %s16 = sphi 0, %s28
    %s17 = sphi 0, %s24
    %s18 = sphi 0, %s16
    %s19 = sphi 0, %s17
    %s20 = sphi 0, %s18
    %s21 = sphi 0, %s19
    %s31 = sphi 0, %s33
    %s34 = sphi 0, %s31
    %s35 = sphi 0, %s34
    %s51 = sphi 0, %s35
    %s57 = sphi 0, %s59
    %s60 = sphi 0, %s57
    %s61 = sphi 0, %s60
    %s77 = sphi 0, %s61
    %s83 = sphi 0, %s85
    %s86 = sphi 0, %s83
    %s87 = sphi 0, %s86
    %s103 = sphi 0, %s87
    %s111 = sphi 0, %s113
    %s114 = sphi 0, %s111
    %s115 = sphi 0, %s114
    %s131 = sphi 0, %s115
  $region4: #{tpu_custom_call.1} parent=0 // loop_header_branch
    %12 = sbr.rel (%p10) target = $region8
  $region5: #{tpu_custom_call.1} parent=0 // loop_body
    %s14 = ssub.s32 %s9, 1
    %s15 = ssub.s32 %s9, 2
    %s22 = sadd.s32 1, %s17
    %p23 = scmp.ge.s32.totalorder %s22, 1
    %s24 = scalar_select %p23, 0, %s22
    %s25 = sadd.s32 1, %s16
    %s26 = scalar_select %p23, %s25, %s16
    %p27 = scmp.ge.s32.totalorder %s26, 2
    %s28 = scalar_select %p27, 0, %s26
    %s29 = ssub.s32 %s16, %s28
    %p30 = scmp.eq.s32.totalorder %s29, 0
    %s32 = sadd.s32 %s31, 1
    %s33 = scalar_select %p30, %s31, %s32
    %p36 = pneg %p30
    %p37 = scmp.eq.s32.totalorder %s9, 1
    %p38 = por %p36, %p37
    %p39 = scmp.ne.s32.totalorder %s31, %s34
    %p40 = scmp.eq.s32.totalorder %s9, 0
    %p41 = por %p39, %p40
    %p42 = scmp.ne.s32.totalorder %s31, %s34
    %p43 = scmp.eq.s32.totalorder %s14, 1
    %p44 = por %p42, %p43
    %p45 = scmp.ne.s32.totalorder %s34, %s35
    %p46 = scmp.eq.s32.totalorder %s14, 0
    %p47 = por %p45, %p46
    %p48 = scmp.ne.s32.totalorder %s34, %s35
    %p49 = scmp.eq.s32.totalorder %s15, 1
    %p50 = por %p48, %p49
    %p52 = scmp.ne.s32.totalorder %s35, %s51
    %p53 = scmp.eq.s32.totalorder %s15, 0
    %p54 = por %p52, %p53
    %s55 = ssub.s32 %s17, %s24
    %p56 = scmp.eq.s32.totalorder %s55, 0
    %s58 = sadd.s32 %s57, 1
    %s59 = scalar_select %p56, %s57, %s58
    %p62 = pneg %p56
    %p63 = scmp.eq.s32.totalorder %s9, 1
    %p64 = por %p62, %p63
    %p65 = scmp.ne.s32.totalorder %s57, %s60
    %p66 = scmp.eq.s32.totalorder %s9, 0
    %p67 = por %p65, %p66
    %p68 = scmp.ne.s32.totalorder %s57, %s60
    %p69 = scmp.eq.s32.totalorder %s14, 1
    %p70 = por %p68, %p69
    %p71 = scmp.ne.s32.totalorder %s60, %s61
    %p72 = scmp.eq.s32.totalorder %s14, 0
    %p73 = por %p71, %p72
    %p74 = scmp.ne.s32.totalorder %s60, %s61
    %p75 = scmp.eq.s32.totalorder %s15, 1
    %p76 = por %p74, %p75
    %p78 = scmp.ne.s32.totalorder %s61, %s77
    %p79 = scmp.eq.s32.totalorder %s15, 0
    %p80 = por %p78, %p79
    %s81 = ssub.s32 %s17, %s24
    %p82 = scmp.eq.s32.totalorder %s81, 0
    %s84 = sadd.s32 %s83, 1
    %s85 = scalar_select %p82, %s83, %s84
    %p88 = pneg %p82
    %p89 = scmp.eq.s32.totalorder %s9, 1
    %p90 = por %p88, %p89
    %p91 = scmp.ne.s32.totalorder %s83, %s86
    %p92 = scmp.eq.s32.totalorder %s9, 0
    %p93 = por %p91, %p92
    %p94 = scmp.ne.s32.totalorder %s83, %s86
    %p95 = scmp.eq.s32.totalorder %s14, 1
    %p96 = por %p94, %p95
    %p97 = scmp.ne.s32.totalorder %s86, %s87
    %p98 = scmp.eq.s32.totalorder %s14, 0
    %p99 = por %p97, %p98
    %p100 = scmp.ne.s32.totalorder %s86, %s87
    %p101 = scmp.eq.s32.totalorder %s15, 1
    %p102 = por %p100, %p101
    %p104 = scmp.ne.s32.totalorder %s87, %s103
    %p105 = scmp.eq.s32.totalorder %s15, 0
    %p106 = por %p104, %p105
    %s107 = ssub.s32 %s16, %s28
    %s108 = ssub.s32 %s17, %s24
    %s109 = sor.u32 %s107, %s108
    %p110 = scmp.eq.s32.totalorder %s109, 0
    %s112 = sadd.s32 %s111, 1
    %s113 = scalar_select %p110, %s111, %s112
    %p116 = pneg %p110
    %p117 = scmp.eq.s32.totalorder %s9, 1
    %p118 = por %p116, %p117
    %p119 = scmp.ne.s32.totalorder %s111, %s114
    %p120 = scmp.eq.s32.totalorder %s9, 0
    %p121 = por %p119, %p120
    %p122 = scmp.ne.s32.totalorder %s111, %s114
    %p123 = scmp.eq.s32.totalorder %s14, 1
    %p124 = por %p122, %p123
    %p125 = scmp.ne.s32.totalorder %s114, %s115
    %p126 = scmp.eq.s32.totalorder %s14, 0
    %p127 = por %p125, %p126
    %p128 = scmp.ne.s32.totalorder %s114, %s115
    %p129 = scmp.eq.s32.totalorder %s15, 1
    %p130 = por %p128, %p129
    %p132 = scmp.ne.s32.totalorder %s115, %s131
    %p133 = scmp.eq.s32.totalorder %s15, 0
    %p134 = por %p132, %p133
    %p135 = scmp.le.s32.totalorder 1, %s9
    %p136 = scmp.lt.s32.totalorder %s9, 3
    %p137 = pnand %p135, %p136
    %p138 = pneg %p137
    // Predicated region
    $region9: #{tpu_custom_call.1} parent=5 // pred_check
      _
    $region10: #{tpu_custom_call.1} parent=5 // pred_check_branch
      %140 = sbr.rel (%p137) target = $region12
    $region11: #{tpu_custom_call.1} parent=5 // pred_region
      %s141 = ssub.s32 %s9, 1
      // Predicated region
      $region13: #{tpu_custom_call.1} parent=11 // pred_check
        %p142 = pneg %p73
      $region14: #{tpu_custom_call.1} parent=11 // pred_check_branch
        %144 = sbr.rel (%p142) target = $region16
      $region15: #{tpu_custom_call.1} parent=11 // pred_region
        %p145 = scmp.lt.s32.totalorder %s19, 0
        %s146 = scalar_select %p145, %s19, 0
        %s147 = smul.addr %s146, 4
        %s148 = scalar_lea.vmem %s1, %s147
      $region16: #{tpu_custom_call.1} parent=11 // pred_fallthru
        _
      // Predicated region
      $region17: #{tpu_custom_call.1} parent=11 // pred_check
        %p149 = pneg %p99
      $region18: #{tpu_custom_call.1} parent=11 // pred_check_branch
        %151 = sbr.rel (%p149) target = $region20
      $region19: #{tpu_custom_call.1} parent=11 // pred_region
        %p152 = scmp.lt.s32.totalorder %s19, 0
        %s153 = scalar_select %p152, %s19, 0
        %s154 = scalar_lea.vmem %s2, %s153
      $region20: #{tpu_custom_call.1} parent=11 // pred_fallthru
        _
    $region12: #{tpu_custom_call.1} parent=5 // pred_fallthru
      _
    %p155 = scmp.lt.s32.totalorder %s9, 2
    // Predicated region
    $region21: #{tpu_custom_call.1} parent=5 // pred_check
      %p156 = pneg %p155
    $region22: #{tpu_custom_call.1} parent=5 // pred_check_branch
      %158 = sbr.rel (%p156) target = $region24
    $region23: #{tpu_custom_call.1} parent=5 // pred_region
      // Predicated region
      $region25: #{tpu_custom_call.1} parent=23 // pred_check
        %p159 = pneg %p41
      $region26: #{tpu_custom_call.1} parent=23 // pred_check_branch
        %161 = sbr.rel (%p159) target = $region28
      $region27: #{tpu_custom_call.1} parent=23 // pred_region
        %s162 = smul.u32 128, %s16
        %p163 = scmp.lt.s32.totalorder %s162, 255
        %s164 = scalar_select %p163, %s162, 255
        %s165 = smul.addr %s164, 2
        %s166 = smul.addr %s165, 4
        %s167 = scalar_lea.vmem %s0, %s166
        %s168 = smul.u32 128, %s16
      $region28: #{tpu_custom_call.1} parent=23 // pred_fallthru
        _
    $region24: #{tpu_custom_call.1} parent=5 // pred_fallthru
      _
    %p169 = scmp.le.s32.totalorder 1, %s9
    %p170 = scmp.lt.s32.totalorder %s9, 3
    %p171 = pnand %p169, %p170
    %p172 = pneg %p171
    // Predicated region
    $region29: #{tpu_custom_call.1} parent=5 // pred_check
      _
    $region30: #{tpu_custom_call.1} parent=5 // pred_check_branch
      %174 = sbr.rel (%p171) target = $region32
    $region31: #{tpu_custom_call.1} parent=5 // pred_region
      %s175 = ssub.s32 %s9, 1
      %s176 = smul.u32 128, %s18
      %p177 = scmp.lt.s32.totalorder %s176, 255
      %s178 = scalar_select %p177, %s176, 255
      %s179 = smul.addr %s178, 2
      %s180 = smul.addr %s179, 4
      %s181 = scalar_lea.vmem %s0, %s180
      %p182 = pneg %p47
      %p183 = pneg %p44
      %p184 = scmp.lt.s32.totalorder %s19, 0
      %s185 = scalar_select %p184, %s19, 0
      %s186 = smul.addr %s185, 4
      %s187 = scalar_lea.vmem %s1, %s186
      %p188 = pneg %p73
      %p189 = pneg %p70
      %p190 = scmp.lt.s32.totalorder %s19, 0
      %s191 = scalar_select %p190, %s19, 0
      %s192 = scalar_lea.vmem %s2, %s191
      %p193 = pneg %p99
      %p194 = pneg %p96
      %p195 = pneg %p127
      %p196 = pneg %p124
      %s197 = smul.u32 128, %s18
      %p198 = scmp.lt.s32.totalorder %s197, 255
      %s199 = scalar_select %p198, %s197, 255
      %p200 = scmp.lt.s32.totalorder %s19, 0
      %s201 = scalar_select %p200, %s19, 0
      %s202 = sadd.s32 %s201, %s199
      %s203 = smul.addr %s202, 4
      %s204 = scalar_lea.vmem %s3, %s203
      %s205 = smul.u32 128, %s18
      %p206 = scmp.lt.s32.totalorder %s205, 255
      %s207 = scalar_select %p206, %s205, 255
      %s208 = smul.addr %s207, 2
      %s209 = smul.addr %s208, 4
      %s210 = scalar_lea.vmem %s0, %s209
      %s211 = smul.u32 128, %s18
      %p212 = scmp.lt.s32.totalorder %s19, 0
      %s213 = scalar_select %p212, %s19, 0
      %s214 = smul.addr %s213, 4
      %s215 = scalar_lea.vmem %s1, %s214
      %p216 = scmp.lt.s32.totalorder %s19, 0
      %s217 = scalar_select %p216, %s19, 0
      %s218 = scalar_lea.vmem %s2, %s217
      %s219 = smul.u32 128, %s18
      %p220 = scmp.lt.s32.totalorder %s219, 255
      %s221 = scalar_select %p220, %s219, 255
      %p222 = scmp.lt.s32.totalorder %s19, 0
      %s223 = scalar_select %p222, %s19, 0
      %s224 = sadd.s32 %s223, %s221
      %s225 = smul.addr %s224, 4
      %s226 = scalar_lea.vmem %s3, %s225
      %s227 = smul.u32 128, %s18
      %v229 = vld [vmem:[%s210] sm:$0xff]
      %v230 = vld [vmem:[%s210 + $0x8] sm:$0xff]
      %v231 = vld [vmem:[%s210 + $0x10] sm:$0xff]
      %v232 = vld [vmem:[%s210 + $0x18] sm:$0xff]
      %v233 = vld [vmem:[%s210 + $0x20] sm:$0xff]
      %v234 = vld [vmem:[%s210 + $0x28] sm:$0xff]
      %v235 = vld [vmem:[%s210 + $0x30] sm:$0xff]
      %v236 = vld [vmem:[%s210 + $0x38] sm:$0xff]
      %v237 = vld [vmem:[%s210 + $0x40] sm:$0xff]
      %v238 = vld [vmem:[%s210 + $0x48] sm:$0xff]
      %v239 = vld [vmem:[%s210 + $0x50] sm:$0xff]
      %v240 = vld [vmem:[%s210 + $0x58] sm:$0xff]
      %v241 = vld [vmem:[%s210 + $0x60] sm:$0xff]
      %v242 = vld [vmem:[%s210 + $0x68] sm:$0xff]
      %v243 = vld [vmem:[%s210 + $0x70] sm:$0xff]
      %v244 = vld [vmem:[%s210 + $0x78] sm:$0xff]
      %v245 = vld [vmem:[%s210 + $0x80] sm:$0xff]
      %v246 = vld [vmem:[%s210 + $0x88] sm:$0xff]
      %v247 = vld [vmem:[%s210 + $0x90] sm:$0xff]
      %v248 = vld [vmem:[%s210 + $0x98] sm:$0xff]
      %v249 = vld [vmem:[%s210 + $0xa0] sm:$0xff]
      %v250 = vld [vmem:[%s210 + $0xa8] sm:$0xff]
      %v251 = vld [vmem:[%s210 + $0xb0] sm:$0xff]
      %v252 = vld [vmem:[%s210 + $0xb8] sm:$0xff]
      %v253 = vld [vmem:[%s210 + $0xc0] sm:$0xff]
      %v254 = vld [vmem:[%s210 + $0xc8] sm:$0xff]
      %v255 = vld [vmem:[%s210 + $0xd0] sm:$0xff]
      %v256 = vld [vmem:[%s210 + $0xd8] sm:$0xff]
      %v257 = vld [vmem:[%s210 + $0xe0] sm:$0xff]
      %v258 = vld [vmem:[%s210 + $0xe8] sm:$0xff]
      %v259 = vld [vmem:[%s210 + $0xf0] sm:$0xff]
      %v260 = vld [vmem:[%s210 + $0xf8] sm:$0xff]
      %v261 = vld [vmem:[%s210 + $0x100] sm:$0xff]
      %v262 = vld [vmem:[%s210 + $0x108] sm:$0xff]
      %v263 = vld [vmem:[%s210 + $0x110] sm:$0xff]
      %v264 = vld [vmem:[%s210 + $0x118] sm:$0xff]
      %v265 = vld [vmem:[%s210 + $0x120] sm:$0xff]
      %v266 = vld [vmem:[%s210 + $0x128] sm:$0xff]
      %v267 = vld [vmem:[%s210 + $0x130] sm:$0xff]
      %v268 = vld [vmem:[%s210 + $0x138] sm:$0xff]
      %v269 = vld [vmem:[%s210 + $0x140] sm:$0xff]
      %v270 = vld [vmem:[%s210 + $0x148] sm:$0xff]
      %v271 = vld [vmem:[%s210 + $0x150] sm:$0xff]
      %v272 = vld [vmem:[%s210 + $0x158] sm:$0xff]
      %v273 = vld [vmem:[%s210 + $0x160] sm:$0xff]
      %v274 = vld [vmem:[%s210 + $0x168] sm:$0xff]
      %v275 = vld [vmem:[%s210 + $0x170] sm:$0xff]
      %v276 = vld [vmem:[%s210 + $0x178] sm:$0xff]
      %v277 = vld [vmem:[%s210 + $0x180] sm:$0xff]
      %v278 = vld [vmem:[%s210 + $0x188] sm:$0xff]
      %v279 = vld [vmem:[%s210 + $0x190] sm:$0xff]
      %v280 = vld [vmem:[%s210 + $0x198] sm:$0xff]
      %v281 = vld [vmem:[%s210 + $0x1a0] sm:$0xff]
      %v282 = vld [vmem:[%s210 + $0x1a8] sm:$0xff]
      %v283 = vld [vmem:[%s210 + $0x1b0] sm:$0xff]
      %v284 = vld [vmem:[%s210 + $0x1b8] sm:$0xff]
      %v285 = vld [vmem:[%s210 + $0x1c0] sm:$0xff]
      %v286 = vld [vmem:[%s210 + $0x1c8] sm:$0xff]
      %v287 = vld [vmem:[%s210 + $0x1d0] sm:$0xff]
      %v288 = vld [vmem:[%s210 + $0x1d8] sm:$0xff]
      %v289 = vld [vmem:[%s210 + $0x1e0] sm:$0xff]
      %v290 = vld [vmem:[%s210 + $0x1e8] sm:$0xff]
      %v291 = vld [vmem:[%s210 + $0x1f0] sm:$0xff]
      %v292 = vld [vmem:[%s210 + $0x1f8] sm:$0xff]
      %v293 = vld [vmem:[%s210 + $0x200] sm:$0xff]
      %v294 = vld [vmem:[%s210 + $0x208] sm:$0xff]
      %v295 = vld [vmem:[%s210 + $0x210] sm:$0xff]
      %v296 = vld [vmem:[%s210 + $0x218] sm:$0xff]
      %v297 = vld [vmem:[%s210 + $0x220] sm:$0xff]
      %v298 = vld [vmem:[%s210 + $0x228] sm:$0xff]
      %v299 = vld [vmem:[%s210 + $0x230] sm:$0xff]
      %v300 = vld [vmem:[%s210 + $0x238] sm:$0xff]
      %v301 = vld [vmem:[%s210 + $0x240] sm:$0xff]
      %v302 = vld [vmem:[%s210 + $0x248] sm:$0xff]
      %v303 = vld [vmem:[%s210 + $0x250] sm:$0xff]
      %v304 = vld [vmem:[%s210 + $0x258] sm:$0xff]
      %v305 = vld [vmem:[%s210 + $0x260] sm:$0xff]
      %v306 = vld [vmem:[%s210 + $0x268] sm:$0xff]
      %v307 = vld [vmem:[%s210 + $0x270] sm:$0xff]
      %v308 = vld [vmem:[%s210 + $0x278] sm:$0xff]
      %v309 = vld [vmem:[%s210 + $0x280] sm:$0xff]
      %v310 = vld [vmem:[%s210 + $0x288] sm:$0xff]
      %v311 = vld [vmem:[%s210 + $0x290] sm:$0xff]
      %v312 = vld [vmem:[%s210 + $0x298] sm:$0xff]
      %v313 = vld [vmem:[%s210 + $0x2a0] sm:$0xff]
      %v314 = vld [vmem:[%s210 + $0x2a8] sm:$0xff]
      %v315 = vld [vmem:[%s210 + $0x2b0] sm:$0xff]
      %v316 = vld [vmem:[%s210 + $0x2b8] sm:$0xff]
      %v317 = vld [vmem:[%s210 + $0x2c0] sm:$0xff]
      %v318 = vld [vmem:[%s210 + $0x2c8] sm:$0xff]
      %v319 = vld [vmem:[%s210 + $0x2d0] sm:$0xff]
      %v320 = vld [vmem:[%s210 + $0x2d8] sm:$0xff]
      %v321 = vld [vmem:[%s210 + $0x2e0] sm:$0xff]
      %v322 = vld [vmem:[%s210 + $0x2e8] sm:$0xff]
      %v323 = vld [vmem:[%s210 + $0x2f0] sm:$0xff]
      %v324 = vld [vmem:[%s210 + $0x2f8] sm:$0xff]
      %v325 = vld [vmem:[%s210 + $0x300] sm:$0xff]
      %v326 = vld [vmem:[%s210 + $0x308] sm:$0xff]
      %v327 = vld [vmem:[%s210 + $0x310] sm:$0xff]
      %v328 = vld [vmem:[%s210 + $0x318] sm:$0xff]
      %v329 = vld [vmem:[%s210 + $0x320] sm:$0xff]
      %v330 = vld [vmem:[%s210 + $0x328] sm:$0xff]
      %v331 = vld [vmem:[%s210 + $0x330] sm:$0xff]
      %v332 = vld [vmem:[%s210 + $0x338] sm:$0xff]
      %v333 = vld [vmem:[%s210 + $0x340] sm:$0xff]
      %v334 = vld [vmem:[%s210 + $0x348] sm:$0xff]
      %v335 = vld [vmem:[%s210 + $0x350] sm:$0xff]
      %v336 = vld [vmem:[%s210 + $0x358] sm:$0xff]
      %v337 = vld [vmem:[%s210 + $0x360] sm:$0xff]
      %v338 = vld [vmem:[%s210 + $0x368] sm:$0xff]
      %v339 = vld [vmem:[%s210 + $0x370] sm:$0xff]
      %v340 = vld [vmem:[%s210 + $0x378] sm:$0xff]
      %v341 = vld [vmem:[%s210 + $0x380] sm:$0xff]
      %v342 = vld [vmem:[%s210 + $0x388] sm:$0xff]
      %v343 = vld [vmem:[%s210 + $0x390] sm:$0xff]
      %v344 = vld [vmem:[%s210 + $0x398] sm:$0xff]
      %v345 = vld [vmem:[%s210 + $0x3a0] sm:$0xff]
      %v346 = vld [vmem:[%s210 + $0x3a8] sm:$0xff]
      %v347 = vld [vmem:[%s210 + $0x3b0] sm:$0xff]
      %v348 = vld [vmem:[%s210 + $0x3b8] sm:$0xff]
      %v349 = vld [vmem:[%s210 + $0x3c0] sm:$0xff]
      %v350 = vld [vmem:[%s210 + $0x3c8] sm:$0xff]
      %v351 = vld [vmem:[%s210 + $0x3d0] sm:$0xff]
      %v352 = vld [vmem:[%s210 + $0x3d8] sm:$0xff]
      %v353 = vld [vmem:[%s210 + $0x3e0] sm:$0xff]
      %v354 = vld [vmem:[%s210 + $0x3e8] sm:$0xff]
      %v355 = vld [vmem:[%s210 + $0x3f0] sm:$0xff]
      %v356 = vld [vmem:[%s210 + $0x3f8] sm:$0xff]
      %v357 = vld [vmem:[%s215] sm:$0xf]
      %v358 = vld [vmem:[%s215 + $0x4] sm:$0xf]
      %v359 = vld [vmem:[%s215 + $0x8] sm:$0xf]
      %v360 = vld [vmem:[%s215 + $0xc] sm:$0xf]
      %v361 = vld [vmem:[%s215 + $0x10] sm:$0xf]
      %v362 = vld [vmem:[%s215 + $0x14] sm:$0xf]
      %v363 = vld [vmem:[%s215 + $0x18] sm:$0xf]
      %v364 = vld [vmem:[%s215 + $0x1c] sm:$0xf]
      %v365 = vld [vmem:[%s215 + $0x20] sm:$0xf]
      %v366 = vld [vmem:[%s215 + $0x24] sm:$0xf]
      %v367 = vld [vmem:[%s215 + $0x28] sm:$0xf]
      %v368 = vld [vmem:[%s215 + $0x2c] sm:$0xf]
      %v369 = vld [vmem:[%s215 + $0x30] sm:$0xf]
      %v370 = vld [vmem:[%s215 + $0x34] sm:$0xf]
      %v371 = vld [vmem:[%s215 + $0x38] sm:$0xf]
      %v372 = vld [vmem:[%s215 + $0x3c] sm:$0xf]
      %v373 = vld [vmem:[%s215 + $0x40] sm:$0xf]
      %v374 = vld [vmem:[%s215 + $0x44] sm:$0xf]
      %v375 = vld [vmem:[%s215 + $0x48] sm:$0x3]
      %v376 = vld [vmem:[%s218] sm:$0x1]
      %v378 = vlaneseq
      %v379 = vshrl.u32 %v378, 7
      %v380 = vsub.s32 0, %v379
      %v381 = vrot.slane %v376, %v380
      %v511 = vunpack.c.l.b16 %v229
      %v512 = vunpack.c.h.b16 %v229
      %v513 = vunpack.c.l.b16 %v230
      %v514 = vunpack.c.h.b16 %v230
      %v515 = vunpack.c.l.b16 %v231
      %v516 = vunpack.c.h.b16 %v231
      %v517 = vunpack.c.l.b16 %v232
      %v518 = vunpack.c.h.b16 %v232
      %v519 = vunpack.c.l.b16 %v233
      %v520 = vunpack.c.h.b16 %v233
      %v521 = vunpack.c.l.b16 %v234
      %v522 = vunpack.c.h.b16 %v234
      %v523 = vunpack.c.l.b16 %v235
      %v524 = vunpack.c.h.b16 %v235
      %v525 = vunpack.c.l.b16 %v236
      %v526 = vunpack.c.h.b16 %v236
      %v527 = vunpack.c.l.b16 %v237
      %v528 = vunpack.c.h.b16 %v237
      %v529 = vunpack.c.l.b16 %v238
      %v530 = vunpack.c.h.b16 %v238
      %v531 = vunpack.c.l.b16 %v239
      %v532 = vunpack.c.h.b16 %v239
      %v533 = vunpack.c.l.b16 %v240
      %v534 = vunpack.c.h.b16 %v240
      %v535 = vunpack.c.l.b16 %v241
      %v536 = vunpack.c.h.b16 %v241
      %v537 = vunpack.c.l.b16 %v242
      %v538 = vunpack.c.h.b16 %v242
      %v539 = vunpack.c.l.b16 %v243
      %v540 = vunpack.c.h.b16 %v243
      %v541 = vunpack.c.l.b16 %v244
      %v542 = vunpack.c.h.b16 %v244
      %v543 = vunpack.c.l.b16 %v245
      %v544 = vunpack.c.h.b16 %v245
      %v545 = vunpack.c.l.b16 %v246
      %v546 = vunpack.c.h.b16 %v246
      %v547 = vunpack.c.l.b16 %v247
      %v548 = vunpack.c.h.b16 %v247
      %v549 = vunpack.c.l.b16 %v248
      %v550 = vunpack.c.h.b16 %v248
      %v551 = vunpack.c.l.b16 %v249
      %v552 = vunpack.c.h.b16 %v249
      %v553 = vunpack.c.l.b16 %v250
      %v554 = vunpack.c.h.b16 %v250
      %v555 = vunpack.c.l.b16 %v251
      %v556 = vunpack.c.h.b16 %v251
      %v557 = vunpack.c.l.b16 %v252
      %v558 = vunpack.c.h.b16 %v252
      %v559 = vunpack.c.l.b16 %v253
      %v560 = vunpack.c.h.b16 %v253
      %v561 = vunpack.c.l.b16 %v254
      %v562 = vunpack.c.h.b16 %v254
      %v563 = vunpack.c.l.b16 %v255
      %v564 = vunpack.c.h.b16 %v255
      %v565 = vunpack.c.l.b16 %v256
      %v566 = vunpack.c.h.b16 %v256
      %v567 = vunpack.c.l.b16 %v257
      %v568 = vunpack.c.h.b16 %v257
      %v569 = vunpack.c.l.b16 %v258
      %v570 = vunpack.c.h.b16 %v258
      %v571 = vunpack.c.l.b16 %v259
      %v572 = vunpack.c.h.b16 %v259
      %v573 = vunpack.c.l.b16 %v260
      %v574 = vunpack.c.h.b16 %v260
      %v575 = vunpack.c.l.b16 %v261
      %v576 = vunpack.c.h.b16 %v261
      %v577 = vunpack.c.l.b16 %v262
      %v578 = vunpack.c.h.b16 %v262
      %v579 = vunpack.c.l.b16 %v263
      %v580 = vunpack.c.h.b16 %v263
      %v581 = vunpack.c.l.b16 %v264
      %v582 = vunpack.c.h.b16 %v264
      %v583 = vunpack.c.l.b16 %v265
      %v584 = vunpack.c.h.b16 %v265
      %v585 = vunpack.c.l.b16 %v266
      %v586 = vunpack.c.h.b16 %v266
      %v587 = vunpack.c.l.b16 %v267
      %v588 = vunpack.c.h.b16 %v267
      %v589 = vunpack.c.l.b16 %v268
      %v590 = vunpack.c.h.b16 %v268
      %v591 = vunpack.c.l.b16 %v269
      %v592 = vunpack.c.h.b16 %v269
      %v593 = vunpack.c.l.b16 %v270
      %v594 = vunpack.c.h.b16 %v270
      %v595 = vunpack.c.l.b16 %v271
      %v596 = vunpack.c.h.b16 %v271
      %v597 = vunpack.c.l.b16 %v272
      %v598 = vunpack.c.h.b16 %v272
      %v599 = vunpack.c.l.b16 %v273
      %v600 = vunpack.c.h.b16 %v273
      %v601 = vunpack.c.l.b16 %v274
      %v602 = vunpack.c.h.b16 %v274
      %v603 = vunpack.c.l.b16 %v275
      %v604 = vunpack.c.h.b16 %v275
      %v605 = vunpack.c.l.b16 %v276
      %v606 = vunpack.c.h.b16 %v276
      %v607 = vunpack.c.l.b16 %v277
      %v608 = vunpack.c.h.b16 %v277
      %v609 = vunpack.c.l.b16 %v278
      %v610 = vunpack.c.h.b16 %v278
      %v611 = vunpack.c.l.b16 %v279
      %v612 = vunpack.c.h.b16 %v279
      %v613 = vunpack.c.l.b16 %v280
      %v614 = vunpack.c.h.b16 %v280
      %v615 = vunpack.c.l.b16 %v281
      %v616 = vunpack.c.h.b16 %v281
      %v617 = vunpack.c.l.b16 %v282
      %v618 = vunpack.c.h.b16 %v282
      %v619 = vunpack.c.l.b16 %v283
      %v620 = vunpack.c.h.b16 %v283
      %v621 = vunpack.c.l.b16 %v284
      %v622 = vunpack.c.h.b16 %v284
      %v623 = vunpack.c.l.b16 %v285
      %v624 = vunpack.c.h.b16 %v285
      %v625 = vunpack.c.l.b16 %v286
      %v626 = vunpack.c.h.b16 %v286
      %v627 = vunpack.c.l.b16 %v287
      %v628 = vunpack.c.h.b16 %v287
      %v629 = vunpack.c.l.b16 %v288
      %v630 = vunpack.c.h.b16 %v288
      %v631 = vunpack.c.l.b16 %v289
      %v632 = vunpack.c.h.b16 %v289
      %v633 = vunpack.c.l.b16 %v290
      %v634 = vunpack.c.h.b16 %v290
      %v635 = vunpack.c.l.b16 %v291
      %v636 = vunpack.c.h.b16 %v291
      %v637 = vunpack.c.l.b16 %v292
      %v638 = vunpack.c.h.b16 %v292
      %v639 = vunpack.c.l.b16 %v293
      %v640 = vunpack.c.h.b16 %v293
      %v641 = vunpack.c.l.b16 %v294
      %v642 = vunpack.c.h.b16 %v294
      %v643 = vunpack.c.l.b16 %v295
      %v644 = vunpack.c.h.b16 %v295
      %v645 = vunpack.c.l.b16 %v296
      %v646 = vunpack.c.h.b16 %v296
      %v647 = vunpack.c.l.b16 %v297
      %v648 = vunpack.c.h.b16 %v297
      %v649 = vunpack.c.l.b16 %v298
      %v650 = vunpack.c.h.b16 %v298
      %v651 = vunpack.c.l.b16 %v299
      %v652 = vunpack.c.h.b16 %v299
      %v653 = vunpack.c.l.b16 %v300
      %v654 = vunpack.c.h.b16 %v300
      %v655 = vunpack.c.l.b16 %v301
      %v656 = vunpack.c.h.b16 %v301
      %v657 = vunpack.c.l.b16 %v302
      %v658 = vunpack.c.h.b16 %v302
      %v659 = vunpack.c.l.b16 %v303
      %v660 = vunpack.c.h.b16 %v303
      %v661 = vunpack.c.l.b16 %v304
      %v662 = vunpack.c.h.b16 %v304
      %v663 = vunpack.c.l.b16 %v305
      %v664 = vunpack.c.h.b16 %v305
      %v665 = vunpack.c.l.b16 %v306
      %v666 = vunpack.c.h.b16 %v306
      %v667 = vunpack.c.l.b16 %v307
      %v668 = vunpack.c.h.b16 %v307
      %v669 = vunpack.c.l.b16 %v308
      %v670 = vunpack.c.h.b16 %v308
      %v671 = vunpack.c.l.b16 %v309
      %v672 = vunpack.c.h.b16 %v309
      %v673 = vunpack.c.l.b16 %v310
      %v674 = vunpack.c.h.b16 %v310
      %v675 = vunpack.c.l.b16 %v311
      %v676 = vunpack.c.h.b16 %v311
      %v677 = vunpack.c.l.b16 %v312
      %v678 = vunpack.c.h.b16 %v312
      %v679 = vunpack.c.l.b16 %v313
      %v680 = vunpack.c.h.b16 %v313
      %v681 = vunpack.c.l.b16 %v314
      %v682 = vunpack.c.h.b16 %v314
      %v683 = vunpack.c.l.b16 %v315
      %v684 = vunpack.c.h.b16 %v315
      %v685 = vunpack.c.l.b16 %v316
      %v686 = vunpack.c.h.b16 %v316
      %v687 = vunpack.c.l.b16 %v317
      %v688 = vunpack.c.h.b16 %v317
      %v689 = vunpack.c.l.b16 %v318
      %v690 = vunpack.c.h.b16 %v318
      %v691 = vunpack.c.l.b16 %v319
      %v692 = vunpack.c.h.b16 %v319
      %v693 = vunpack.c.l.b16 %v320
      %v694 = vunpack.c.h.b16 %v320
      %v695 = vunpack.c.l.b16 %v321
      %v696 = vunpack.c.h.b16 %v321
      %v697 = vunpack.c.l.b16 %v322
      %v698 = vunpack.c.h.b16 %v322
      %v699 = vunpack.c.l.b16 %v323
      %v700 = vunpack.c.h.b16 %v323
      %v701 = vunpack.c.l.b16 %v324
      %v702 = vunpack.c.h.b16 %v324
      %v703 = vunpack.c.l.b16 %v325
      %v704 = vunpack.c.h.b16 %v325
      %v705 = vunpack.c.l.b16 %v326
      %v706 = vunpack.c.h.b16 %v326
      %v707 = vunpack.c.l.b16 %v327
      %v708 = vunpack.c.h.b16 %v327
      %v709 = vunpack.c.l.b16 %v328
      %v710 = vunpack.c.h.b16 %v328
      %v711 = vunpack.c.l.b16 %v329
      %v712 = vunpack.c.h.b16 %v329
      %v713 = vunpack.c.l.b16 %v330
      %v714 = vunpack.c.h.b16 %v330
      %v715 = vunpack.c.l.b16 %v331
      %v716 = vunpack.c.h.b16 %v331
      %v717 = vunpack.c.l.b16 %v332
      %v718 = vunpack.c.h.b16 %v332
      %v719 = vunpack.c.l.b16 %v333
      %v720 = vunpack.c.h.b16 %v333
      %v721 = vunpack.c.l.b16 %v334
      %v722 = vunpack.c.h.b16 %v334
      %v723 = vunpack.c.l.b16 %v335
      %v724 = vunpack.c.h.b16 %v335
      %v725 = vunpack.c.l.b16 %v336
      %v726 = vunpack.c.h.b16 %v336
      %v727 = vunpack.c.l.b16 %v337
      %v728 = vunpack.c.h.b16 %v337
      %v729 = vunpack.c.l.b16 %v338
      %v730 = vunpack.c.h.b16 %v338
      %v731 = vunpack.c.l.b16 %v339
      %v732 = vunpack.c.h.b16 %v339
      %v733 = vunpack.c.l.b16 %v340
      %v734 = vunpack.c.h.b16 %v340
      %v735 = vunpack.c.l.b16 %v341
      %v736 = vunpack.c.h.b16 %v341
      %v737 = vunpack.c.l.b16 %v342
      %v738 = vunpack.c.h.b16 %v342
      %v739 = vunpack.c.l.b16 %v343
      %v740 = vunpack.c.h.b16 %v343
      %v741 = vunpack.c.l.b16 %v344
      %v742 = vunpack.c.h.b16 %v344
      %v743 = vunpack.c.l.b16 %v345
      %v744 = vunpack.c.h.b16 %v345
      %v745 = vunpack.c.l.b16 %v346
      %v746 = vunpack.c.h.b16 %v346
      %v747 = vunpack.c.l.b16 %v347
      %v748 = vunpack.c.h.b16 %v347
      %v749 = vunpack.c.l.b16 %v348
      %v750 = vunpack.c.h.b16 %v348
      %v751 = vunpack.c.l.b16 %v349
      %v752 = vunpack.c.h.b16 %v349
      %v753 = vunpack.c.l.b16 %v350
      %v754 = vunpack.c.h.b16 %v350
      %v755 = vunpack.c.l.b16 %v351
      %v756 = vunpack.c.h.b16 %v351
      %v757 = vunpack.c.l.b16 %v352
      %v758 = vunpack.c.h.b16 %v352
      %v759 = vunpack.c.l.b16 %v353
      %v760 = vunpack.c.h.b16 %v353
      %v761 = vunpack.c.l.b16 %v354
      %v762 = vunpack.c.h.b16 %v354
      %v763 = vunpack.c.l.b16 %v355
      %v764 = vunpack.c.h.b16 %v355
      %v765 = vunpack.c.l.b16 %v356
      %v766 = vunpack.c.h.b16 %v356
      %v767 = vpack.c.b16 %v513, %v511
      %v768 = vpack.c.b16 %v514, %v512
      %v769 = vpack.c.b16 %v517, %v515
      %v770 = vpack.c.b16 %v518, %v516
      %v771 = vpack.c.b16 %v521, %v519
      %v772 = vpack.c.b16 %v522, %v520
      %v773 = vpack.c.b16 %v525, %v523
      %v774 = vpack.c.b16 %v526, %v524
      %v775 = vpack.c.b16 %v529, %v527
      %v776 = vpack.c.b16 %v530, %v528
      %v777 = vpack.c.b16 %v533, %v531
      %v778 = vpack.c.b16 %v534, %v532
      %v779 = vpack.c.b16 %v537, %v535
      %v780 = vpack.c.b16 %v538, %v536
      %v781 = vpack.c.b16 %v541, %v539
      %v782 = vpack.c.b16 %v542, %v540
      %v783 = vpack.c.b16 %v545, %v543
      %v784 = vpack.c.b16 %v546, %v544
      %v785 = vpack.c.b16 %v549, %v547
      %v786 = vpack.c.b16 %v550, %v548
      %v787 = vpack.c.b16 %v553, %v551
      %v788 = vpack.c.b16 %v554, %v552
      %v789 = vpack.c.b16 %v557, %v555
      %v790 = vpack.c.b16 %v558, %v556
      %v791 = vpack.c.b16 %v561, %v559
      %v792 = vpack.c.b16 %v562, %v560
      %v793 = vpack.c.b16 %v565, %v563
      %v794 = vpack.c.b16 %v566, %v564
      %v795 = vpack.c.b16 %v569, %v567
      %v796 = vpack.c.b16 %v570, %v568
      %v797 = vpack.c.b16 %v573, %v571
      %v798 = vpack.c.b16 %v574, %v572
      %v799 = vpack.c.b16 %v577, %v575
      %v800 = vpack.c.b16 %v578, %v576
      %v801 = vpack.c.b16 %v581, %v579
      %v802 = vpack.c.b16 %v582, %v580
      %v803 = vpack.c.b16 %v585, %v583
      %v804 = vpack.c.b16 %v586, %v584
      %v805 = vpack.c.b16 %v589, %v587
      %v806 = vpack.c.b16 %v590, %v588
      %v807 = vpack.c.b16 %v593, %v591
      %v808 = vpack.c.b16 %v594, %v592
      %v809 = vpack.c.b16 %v597, %v595
      %v810 = vpack.c.b16 %v598, %v596
      %v811 = vpack.c.b16 %v601, %v599
      %v812 = vpack.c.b16 %v602, %v600
      %v813 = vpack.c.b16 %v605, %v603
      %v814 = vpack.c.b16 %v606, %v604
      %v815 = vpack.c.b16 %v609, %v607
      %v816 = vpack.c.b16 %v610, %v608
      %v817 = vpack.c.b16 %v613, %v611
      %v818 = vpack.c.b16 %v614, %v612
      %v819 = vpack.c.b16 %v617, %v615
      %v820 = vpack.c.b16 %v618, %v616
      %v821 = vpack.c.b16 %v621, %v619
      %v822 = vpack.c.b16 %v622, %v620
      %v823 = vpack.c.b16 %v625, %v623
      %v824 = vpack.c.b16 %v626, %v624
      %v825 = vpack.c.b16 %v629, %v627
      %v826 = vpack.c.b16 %v630, %v628
      %v827 = vpack.c.b16 %v633, %v631
      %v828 = vpack.c.b16 %v634, %v632
      %v829 = vpack.c.b16 %v637, %v635
      %v830 = vpack.c.b16 %v638, %v636
      %v831 = vpack.c.b16 %v641, %v639
      %v832 = vpack.c.b16 %v642, %v640
      %v833 = vpack.c.b16 %v645, %v643
      %v834 = vpack.c.b16 %v646, %v644
      %v835 = vpack.c.b16 %v649, %v647
      %v836 = vpack.c.b16 %v650, %v648
      %v837 = vpack.c.b16 %v653, %v651
      %v838 = vpack.c.b16 %v654, %v652
      %v839 = vpack.c.b16 %v657, %v655
      %v840 = vpack.c.b16 %v658, %v656
      %v841 = vpack.c.b16 %v661, %v659
      %v842 = vpack.c.b16 %v662, %v660
      %v843 = vpack.c.b16 %v665, %v663
      %v844 = vpack.c.b16 %v666, %v664
      %v845 = vpack.c.b16 %v669, %v667
      %v846 = vpack.c.b16 %v670, %v668
      %v847 = vpack.c.b16 %v673, %v671
      %v848 = vpack.c.b16 %v674, %v672
      %v849 = vpack.c.b16 %v677, %v675
      %v850 = vpack.c.b16 %v678, %v676
      %v851 = vpack.c.b16 %v681, %v679
      %v852 = vpack.c.b16 %v682, %v680
      %v853 = vpack.c.b16 %v685, %v683
      %v854 = vpack.c.b16 %v686, %v684
      %v855 = vpack.c.b16 %v689, %v687
      %v856 = vpack.c.b16 %v690, %v688
      %v857 = vpack.c.b16 %v693, %v691
      %v858 = vpack.c.b16 %v694, %v692
      %v859 = vpack.c.b16 %v697, %v695
      %v860 = vpack.c.b16 %v698, %v696
      %v861 = vpack.c.b16 %v701, %v699
      %v862 = vpack.c.b16 %v702, %v700
      %v863 = vpack.c.b16 %v705, %v703
      %v864 = vpack.c.b16 %v706, %v704
      %v865 = vpack.c.b16 %v709, %v707
      %v866 = vpack.c.b16 %v710, %v708
      %v867 = vpack.c.b16 %v713, %v711
      %v868 = vpack.c.b16 %v714, %v712
      %v869 = vpack.c.b16 %v717, %v715
      %v870 = vpack.c.b16 %v718, %v716
      %v871 = vpack.c.b16 %v721, %v719
      %v872 = vpack.c.b16 %v722, %v720
      %v873 = vpack.c.b16 %v725, %v723
      %v874 = vpack.c.b16 %v726, %v724
      %v875 = vpack.c.b16 %v729, %v727
      %v876 = vpack.c.b16 %v730, %v728
      %v877 = vpack.c.b16 %v733, %v731
      %v878 = vpack.c.b16 %v734, %v732
      %v879 = vpack.c.b16 %v737, %v735
      %v880 = vpack.c.b16 %v738, %v736
      %v881 = vpack.c.b16 %v741, %v739
      %v882 = vpack.c.b16 %v742, %v740
      %v883 = vpack.c.b16 %v745, %v743
      %v884 = vpack.c.b16 %v746, %v744
      %v885 = vpack.c.b16 %v749, %v747
      %v886 = vpack.c.b16 %v750, %v748
      %v887 = vpack.c.b16 %v753, %v751
      %v888 = vpack.c.b16 %v754, %v752
      %v889 = vpack.c.b16 %v757, %v755
      %v890 = vpack.c.b16 %v758, %v756
      %v891 = vpack.c.b16 %v761, %v759
      %v892 = vpack.c.b16 %v762, %v760
      %v893 = vpack.c.b16 %v765, %v763
      %v894 = vpack.c.b16 %v766, %v764
      %v978 = vunpack.c.l.b16 %v357
      %v979 = vunpack.c.l.b16 %v358
      %v980 = vunpack.c.l.b16 %v359
      %v981 = vunpack.c.l.b16 %v360
      %v982 = vunpack.c.l.b16 %v361
      %v983 = vunpack.c.l.b16 %v362
      %v984 = vunpack.c.l.b16 %v363
      %v985 = vunpack.c.l.b16 %v364
      %v986 = vunpack.c.l.b16 %v365
      %v987 = vunpack.c.l.b16 %v366
      %v988 = vunpack.c.l.b16 %v367
      %v989 = vunpack.c.l.b16 %v368
      %v990 = vunpack.c.l.b16 %v369
      %v991 = vunpack.c.l.b16 %v370
      %v992 = vunpack.c.l.b16 %v371
      %v993 = vunpack.c.l.b16 %v372
      %v994 = vunpack.c.l.b16 %v373
      %v995 = vunpack.c.l.b16 %v374
      %v996 = vunpack.c.l.b16 %v375
      %v997 = vpack.c.b16 %v979, %v978
      %v998 = vpack.c.b16 %v981, %v980
      %v999 = vpack.c.b16 %v983, %v982
      %v1000 = vpack.c.b16 %v985, %v984
      %v1001 = vpack.c.b16 %v987, %v986
      %v1002 = vpack.c.b16 %v989, %v988
      %v1003 = vpack.c.b16 %v991, %v990
      %v1004 = vpack.c.b16 %v993, %v992
      %v1005 = vpack.c.b16 %v995, %v994
      %v1006 = vpack.c.b16 %v996, %v996
      %vm1016 = vcmask 154624
      %v1018 = vsel %vm1016, %v768, 0
      %v1021 = vsel %vm1016, %v770, 0
      %v1024 = vsel %vm1016, %v772, 0
      %v1027 = vsel %vm1016, %v774, 0
      %v1030 = vsel %vm1016, %v776, 0
      %v1033 = vsel %vm1016, %v778, 0
      %v1036 = vsel %vm1016, %v780, 0
      %v1039 = vsel %vm1016, %v782, 0
      %v1042 = vsel %vm1016, %v784, 0
      %v1045 = vsel %vm1016, %v786, 0
      %v1048 = vsel %vm1016, %v788, 0
      %v1051 = vsel %vm1016, %v790, 0
      %v1054 = vsel %vm1016, %v792, 0
      %v1057 = vsel %vm1016, %v794, 0
      %v1060 = vsel %vm1016, %v796, 0
      %v1063 = vsel %vm1016, %v798, 0
      %v1066 = vsel %vm1016, %v800, 0
      %v1069 = vsel %vm1016, %v802, 0
      %v1072 = vsel %vm1016, %v804, 0
      %v1075 = vsel %vm1016, %v806, 0
      %v1078 = vsel %vm1016, %v808, 0
      %v1081 = vsel %vm1016, %v810, 0
      %v1084 = vsel %vm1016, %v812, 0
      %v1087 = vsel %vm1016, %v814, 0
      %v1090 = vsel %vm1016, %v816, 0
      %v1093 = vsel %vm1016, %v818, 0
      %v1096 = vsel %vm1016, %v820, 0
      %v1099 = vsel %vm1016, %v822, 0
      %v1102 = vsel %vm1016, %v824, 0
      %v1105 = vsel %vm1016, %v826, 0
      %v1108 = vsel %vm1016, %v828, 0
      %v1111 = vsel %vm1016, %v830, 0
      %v1114 = vsel %vm1016, %v832, 0
      %v1117 = vsel %vm1016, %v834, 0
      %v1120 = vsel %vm1016, %v836, 0
      %v1123 = vsel %vm1016, %v838, 0
      %v1126 = vsel %vm1016, %v840, 0
      %v1129 = vsel %vm1016, %v842, 0
      %v1132 = vsel %vm1016, %v844, 0
      %v1135 = vsel %vm1016, %v846, 0
      %v1138 = vsel %vm1016, %v848, 0
      %v1141 = vsel %vm1016, %v850, 0
      %v1144 = vsel %vm1016, %v852, 0
      %v1147 = vsel %vm1016, %v854, 0
      %v1150 = vsel %vm1016, %v856, 0
      %v1153 = vsel %vm1016, %v858, 0
      %v1156 = vsel %vm1016, %v860, 0
      %v1159 = vsel %vm1016, %v862, 0
      %v1162 = vsel %vm1016, %v864, 0
      %v1165 = vsel %vm1016, %v866, 0
      %v1168 = vsel %vm1016, %v868, 0
      %v1171 = vsel %vm1016, %v870, 0
      %v1174 = vsel %vm1016, %v872, 0
      %v1177 = vsel %vm1016, %v874, 0
      %v1180 = vsel %vm1016, %v876, 0
      %v1183 = vsel %vm1016, %v878, 0
      %v1186 = vsel %vm1016, %v880, 0
      %v1189 = vsel %vm1016, %v882, 0
      %v1192 = vsel %vm1016, %v884, 0
      %v1195 = vsel %vm1016, %v886, 0
      %v1198 = vsel %vm1016, %v888, 0
      %v1201 = vsel %vm1016, %v890, 0
      %v1204 = vsel %vm1016, %v892, 0
      %v1207 = vsel %vm1016, %v894, 0
      %vm1209 = vcmask 1040384
      %vm1210 = vcmask 1041408
      %v1211 = vsel %vm1209, 4294967295, 65535
      %v1212 = vsel %vm1210, %v1211, 0
      %v1214 = vand.u32 %v1006, %v1212
      %1216 = vmatprep.subr.bf16.mxu0 0
      %1217 = vmatpush1.bf16.msra.mxu0 %v1004
      %1218 = vmatprep.subr.bf16.mxu0 0
      %1219 = vmatpush1.bf16.msra.mxu0 %v1003
      %1220 = vmatprep.subr.bf16.mxu0 0
      %1221 = vmatpush1.bf16.msra.mxu0 %v1002
      %1222 = vmatprep.subr.bf16.mxu0 0
      %1223 = vmatpush1.bf16.msra.mxu0 %v1001
      %1224 = vmatprep.subr.bf16.mxu0 0
      %1225 = vmatpush1.bf16.msra.mxu0 %v1000
      %1226 = vmatprep.subr.bf16.mxu0 0
      %1227 = vmatpush1.bf16.msra.mxu0 %v999
      %1228 = vmatprep.subr.bf16.mxu0 0
      %1229 = vmatpush1.bf16.msra.mxu0 %v998
      %1230 = vmatprep.subr.bf16.mxu0 0
      %1231 = vmatpush1.bf16.msra.mxu0 %v997
      %1232 = vmatprep.subr.bf16.mxu0 0
      %1233 = vmatpush2.bf16.msra.mxu0 0
      %1234 = vmatprep.subr.bf16.mxu0 0
      %1235 = vmatpush2.bf16.msra.mxu0 0
      %1236 = vmatprep.subr.bf16.mxu0 0
      %1237 = vmatpush2.bf16.msra.mxu0 0
      %1238 = vmatprep.subr.bf16.mxu0 0
      %1239 = vmatpush2.bf16.msra.mxu0 0
      %1240 = vmatprep.subr.bf16.mxu0 0
      %1241 = vmatpush2.bf16.msra.mxu0 0
      %1242 = vmatprep.subr.bf16.mxu0 0
      %1243 = vmatpush2.bf16.msra.mxu0 0
      %1244 = vmatprep.subr.bf16.mxu0 0
      %1245 = vmatpush2.bf16.msra.mxu0 %v1214
      %1246 = vmatprep.subr.bf16.mxu0 0
      %1247 = vmatpush2.bf16.msra.mxu0 %v1005
      %1248 = vmatprep.mubr.bf16.mxu0 %v1018
      %1249 = vmatmul.mubr.bf16.gmra.mxu0 %v767
      %v1250 = vpop.f32.mrf.mxu0
      %v1251 = vadd.f32 %v381, %v1250
      %v1252 = vpop.f32.mrf.mxu0
      %v1253 = vpop.f32.mrf.mxu0
      %v1254 = vadd.f32 %v381, %v1253
      %v1255 = vpop.f32.mrf.mxu0
      %1256 = vmatprep.mubr.bf16.mxu0 %v1021
      %1257 = vmatmul.mubr.bf16.gmra.mxu0 %v769
      %v1258 = vpop.f32.mrf.mxu0
      %v1259 = vadd.f32 %v381, %v1258
      %v1260 = vpop.f32.mrf.mxu0
      %v1261 = vpop.f32.mrf.mxu0
      %v1262 = vadd.f32 %v381, %v1261
      %v1263 = vpop.f32.mrf.mxu0
      %1264 = vmatprep.mubr.bf16.mxu0 %v1024
      %1265 = vmatmul.mubr.bf16.gmra.mxu0 %v771
      %v1266 = vpop.f32.mrf.mxu0
      %v1267 = vadd.f32 %v381, %v1266
      %v1268 = vpop.f32.mrf.mxu0
      %v1269 = vpop.f32.mrf.mxu0
      %v1270 = vadd.f32 %v381, %v1269
      %v1271 = vpop.f32.mrf.mxu0
      %1272 = vmatprep.mubr.bf16.mxu0 %v1027
      %1273 = vmatmul.mubr.bf16.gmra.mxu0 %v773
      %v1274 = vpop.f32.mrf.mxu0
      %v1275 = vadd.f32 %v381, %v1274
      %v1276 = vpop.f32.mrf.mxu0
      %v1277 = vpop.f32.mrf.mxu0
      %v1278 = vadd.f32 %v381, %v1277
      %v1279 = vpop.f32.mrf.mxu0
      %1280 = vmatprep.mubr.bf16.mxu0 %v1030
      %1281 = vmatmul.mubr.bf16.gmra.mxu0 %v775
      %v1282 = vpop.f32.mrf.mxu0
      %v1283 = vadd.f32 %v381, %v1282
      %v1284 = vpop.f32.mrf.mxu0
      %v1285 = vpop.f32.mrf.mxu0
      %v1286 = vadd.f32 %v381, %v1285
      %v1287 = vpop.f32.mrf.mxu0
      %1288 = vmatprep.mubr.bf16.mxu0 %v1033
      %1289 = vmatmul.mubr.bf16.gmra.mxu0 %v777
      %v1290 = vpop.f32.mrf.mxu0
      %v1291 = vadd.f32 %v381, %v1290
      %v1292 = vpop.f32.mrf.mxu0
      %v1293 = vpop.f32.mrf.mxu0
      %v1294 = vadd.f32 %v381, %v1293
      %v1295 = vpop.f32.mrf.mxu0
      %1296 = vmatprep.mubr.bf16.mxu0 %v1036
      %1297 = vmatmul.mubr.bf16.gmra.mxu0 %v779
      %v1298 = vpop.f32.mrf.mxu0
      %v1299 = vadd.f32 %v381, %v1298
      %v1300 = vpop.f32.mrf.mxu0
      %v1301 = vpop.f32.mrf.mxu0
      %v1302 = vadd.f32 %v381, %v1301
      %v1303 = vpop.f32.mrf.mxu0
      %1304 = vmatprep.mubr.bf16.mxu0 %v1039
      %1305 = vmatmul.mubr.bf16.gmra.mxu0 %v781
      %v1306 = vpop.f32.mrf.mxu0
      %v1307 = vadd.f32 %v381, %v1306
      %v1308 = vpop.f32.mrf.mxu0
      %v1309 = vpop.f32.mrf.mxu0
      %v1310 = vadd.f32 %v381, %v1309
      %v1311 = vpop.f32.mrf.mxu0
      %1312 = vmatprep.mubr.bf16.mxu0 %v1042
      %1313 = vmatmul.mubr.bf16.gmra.mxu0 %v783
      %v1314 = vpop.f32.mrf.mxu0
      %v1315 = vadd.f32 %v381, %v1314
      %v1316 = vpop.f32.mrf.mxu0
      %v1317 = vpop.f32.mrf.mxu0
      %v1318 = vadd.f32 %v381, %v1317
      %v1319 = vpop.f32.mrf.mxu0
      %1320 = vmatprep.mubr.bf16.mxu0 %v1045
      %1321 = vmatmul.mubr.bf16.gmra.mxu0 %v785
      %v1322 = vpop.f32.mrf.mxu0
      %v1323 = vadd.f32 %v381, %v1322
      %v1324 = vpop.f32.mrf.mxu0
      %v1325 = vpop.f32.mrf.mxu0
      %v1326 = vadd.f32 %v381, %v1325
      %v1327 = vpop.f32.mrf.mxu0
      %1328 = vmatprep.mubr.bf16.mxu0 %v1048
      %1329 = vmatmul.mubr.bf16.gmra.mxu0 %v787
      %v1330 = vpop.f32.mrf.mxu0
      %v1331 = vadd.f32 %v381, %v1330
      %v1332 = vpop.f32.mrf.mxu0
      %v1333 = vpop.f32.mrf.mxu0
      %v1334 = vadd.f32 %v381, %v1333
      %v1335 = vpop.f32.mrf.mxu0
      %1336 = vmatprep.mubr.bf16.mxu0 %v1051
      %1337 = vmatmul.mubr.bf16.gmra.mxu0 %v789
      %v1338 = vpop.f32.mrf.mxu0
      %v1339 = vadd.f32 %v381, %v1338
      %v1340 = vpop.f32.mrf.mxu0
      %v1341 = vpop.f32.mrf.mxu0
      %v1342 = vadd.f32 %v381, %v1341
      %v1343 = vpop.f32.mrf.mxu0
      %1344 = vmatprep.mubr.bf16.mxu0 %v1054
      %1345 = vmatmul.mubr.bf16.gmra.mxu0 %v791
      %v1346 = vpop.f32.mrf.mxu0
      %v1347 = vadd.f32 %v381, %v1346
      %v1348 = vpop.f32.mrf.mxu0
      %v1349 = vpop.f32.mrf.mxu0
      %v1350 = vadd.f32 %v381, %v1349
      %v1351 = vpop.f32.mrf.mxu0
      %1352 = vmatprep.mubr.bf16.mxu0 %v1057
      %1353 = vmatmul.mubr.bf16.gmra.mxu0 %v793
      %v1354 = vpop.f32.mrf.mxu0
      %v1355 = vadd.f32 %v381, %v1354
      %v1356 = vpop.f32.mrf.mxu0
      %v1357 = vpop.f32.mrf.mxu0
      %v1358 = vadd.f32 %v381, %v1357
      %v1359 = vpop.f32.mrf.mxu0
      %1360 = vmatprep.mubr.bf16.mxu0 %v1060
      %1361 = vmatmul.mubr.bf16.gmra.mxu0 %v795
      %v1362 = vpop.f32.mrf.mxu0
      %v1363 = vadd.f32 %v381, %v1362
      %v1364 = vpop.f32.mrf.mxu0
      %v1365 = vpop.f32.mrf.mxu0
      %v1366 = vadd.f32 %v381, %v1365
      %v1367 = vpop.f32.mrf.mxu0
      %1368 = vmatprep.mubr.bf16.mxu0 %v1063
      %1369 = vmatmul.mubr.bf16.gmra.mxu0 %v797
      %v1370 = vpop.f32.mrf.mxu0
      %v1371 = vadd.f32 %v381, %v1370
      %v1372 = vpop.f32.mrf.mxu0
      %v1373 = vpop.f32.mrf.mxu0
      %v1374 = vadd.f32 %v381, %v1373
      %v1375 = vpop.f32.mrf.mxu0
      %1376 = vmatprep.mubr.bf16.mxu0 %v1066
      %1377 = vmatmul.mubr.bf16.gmra.mxu0 %v799
      %v1378 = vpop.f32.mrf.mxu0
      %v1379 = vadd.f32 %v381, %v1378
      %v1380 = vpop.f32.mrf.mxu0
      %v1381 = vpop.f32.mrf.mxu0
      %v1382 = vadd.f32 %v381, %v1381
      %v1383 = vpop.f32.mrf.mxu0
      %1384 = vmatprep.mubr.bf16.mxu0 %v1069
      %1385 = vmatmul.mubr.bf16.gmra.mxu0 %v801
      %v1386 = vpop.f32.mrf.mxu0
      %v1387 = vadd.f32 %v381, %v1386
      %v1388 = vpop.f32.mrf.mxu0
      %v1389 = vpop.f32.mrf.mxu0
      %v1390 = vadd.f32 %v381, %v1389
      %v1391 = vpop.f32.mrf.mxu0
      %1392 = vmatprep.mubr.bf16.mxu0 %v1072
      %1393 = vmatmul.mubr.bf16.gmra.mxu0 %v803
      %v1394 = vpop.f32.mrf.mxu0
      %v1395 = vadd.f32 %v381, %v1394
      %v1396 = vpop.f32.mrf.mxu0
      %v1397 = vpop.f32.mrf.mxu0
      %v1398 = vadd.f32 %v381, %v1397
      %v1399 = vpop.f32.mrf.mxu0
      %1400 = vmatprep.mubr.bf16.mxu0 %v1075
      %1401 = vmatmul.mubr.bf16.gmra.mxu0 %v805
      %v1402 = vpop.f32.mrf.mxu0
      %v1403 = vadd.f32 %v381, %v1402
      %v1404 = vpop.f32.mrf.mxu0
      %v1405 = vpop.f32.mrf.mxu0
      %v1406 = vadd.f32 %v381, %v1405
      %v1407 = vpop.f32.mrf.mxu0
      %1408 = vmatprep.mubr.bf16.mxu0 %v1078
      %1409 = vmatmul.mubr.bf16.gmra.mxu0 %v807
      %v1410 = vpop.f32.mrf.mxu0
      %v1411 = vadd.f32 %v381, %v1410
      %v1412 = vpop.f32.mrf.mxu0
      %v1413 = vpop.f32.mrf.mxu0
      %v1414 = vadd.f32 %v381, %v1413
      %v1415 = vpop.f32.mrf.mxu0
      %1416 = vmatprep.mubr.bf16.mxu0 %v1081
      %1417 = vmatmul.mubr.bf16.gmra.mxu0 %v809
      %v1418 = vpop.f32.mrf.mxu0
      %v1419 = vadd.f32 %v381, %v1418
      %v1420 = vpop.f32.mrf.mxu0
      %v1421 = vpop.f32.mrf.mxu0
      %v1422 = vadd.f32 %v381, %v1421
      %v1423 = vpop.f32.mrf.mxu0
      %1424 = vmatprep.mubr.bf16.mxu0 %v1084
      %1425 = vmatmul.mubr.bf16.gmra.mxu0 %v811
      %v1426 = vpop.f32.mrf.mxu0
      %v1427 = vadd.f32 %v381, %v1426
      %v1428 = vpop.f32.mrf.mxu0
      %v1429 = vpop.f32.mrf.mxu0
      %v1430 = vadd.f32 %v381, %v1429
      %v1431 = vpop.f32.mrf.mxu0
      %1432 = vmatprep.mubr.bf16.mxu0 %v1087
      %1433 = vmatmul.mubr.bf16.gmra.mxu0 %v813
      %v1434 = vpop.f32.mrf.mxu0
      %v1435 = vadd.f32 %v381, %v1434
      %v1436 = vpop.f32.mrf.mxu0
      %v1437 = vpop.f32.mrf.mxu0
      %v1438 = vadd.f32 %v381, %v1437
      %v1439 = vpop.f32.mrf.mxu0
      %1440 = vmatprep.mubr.bf16.mxu0 %v1090
      %1441 = vmatmul.mubr.bf16.gmra.mxu0 %v815
      %v1442 = vpop.f32.mrf.mxu0
      %v1443 = vadd.f32 %v381, %v1442
      %v1444 = vpop.f32.mrf.mxu0
      %v1445 = vpop.f32.mrf.mxu0
      %v1446 = vadd.f32 %v381, %v1445
      %v1447 = vpop.f32.mrf.mxu0
      %1448 = vmatprep.mubr.bf16.mxu0 %v1093
      %1449 = vmatmul.mubr.bf16.gmra.mxu0 %v817
      %v1450 = vpop.f32.mrf.mxu0
      %v1451 = vadd.f32 %v381, %v1450
      %v1452 = vpop.f32.mrf.mxu0
      %v1453 = vpop.f32.mrf.mxu0
      %v1454 = vadd.f32 %v381, %v1453
      %v1455 = vpop.f32.mrf.mxu0
      %1456 = vmatprep.mubr.bf16.mxu0 %v1096
      %1457 = vmatmul.mubr.bf16.gmra.mxu0 %v819
      %v1458 = vpop.f32.mrf.mxu0
      %v1459 = vadd.f32 %v381, %v1458
      %v1460 = vpop.f32.mrf.mxu0
      %v1461 = vpop.f32.mrf.mxu0
      %v1462 = vadd.f32 %v381, %v1461
      %v1463 = vpop.f32.mrf.mxu0
      %1464 = vmatprep.mubr.bf16.mxu0 %v1099
      %1465 = vmatmul.mubr.bf16.gmra.mxu0 %v821
      %v1466 = vpop.f32.mrf.mxu0
      %v1467 = vadd.f32 %v381, %v1466
      %v1468 = vpop.f32.mrf.mxu0
      %v1469 = vpop.f32.mrf.mxu0
      %v1470 = vadd.f32 %v381, %v1469
      %v1471 = vpop.f32.mrf.mxu0
      %1472 = vmatprep.mubr.bf16.mxu0 %v1102
      %1473 = vmatmul.mubr.bf16.gmra.mxu0 %v823
      %v1474 = vpop.f32.mrf.mxu0
      %v1475 = vadd.f32 %v381, %v1474
      %v1476 = vpop.f32.mrf.mxu0
      %v1477 = vpop.f32.mrf.mxu0
      %v1478 = vadd.f32 %v381, %v1477
      %v1479 = vpop.f32.mrf.mxu0
      %1480 = vmatprep.mubr.bf16.mxu0 %v1105
      %1481 = vmatmul.mubr.bf16.gmra.mxu0 %v825
      %v1482 = vpop.f32.mrf.mxu0
      %v1483 = vadd.f32 %v381, %v1482
      %v1484 = vpop.f32.mrf.mxu0
      %v1485 = vpop.f32.mrf.mxu0
      %v1486 = vadd.f32 %v381, %v1485
      %v1487 = vpop.f32.mrf.mxu0
      %1488 = vmatprep.mubr.bf16.mxu0 %v1108
      %1489 = vmatmul.mubr.bf16.gmra.mxu0 %v827
      %v1490 = vpop.f32.mrf.mxu0
      %v1491 = vadd.f32 %v381, %v1490
      %v1492 = vpop.f32.mrf.mxu0
      %v1493 = vpop.f32.mrf.mxu0
      %v1494 = vadd.f32 %v381, %v1493
      %v1495 = vpop.f32.mrf.mxu0
      %1496 = vmatprep.mubr.bf16.mxu0 %v1111
      %1497 = vmatmul.mubr.bf16.gmra.mxu0 %v829
      %v1498 = vpop.f32.mrf.mxu0
      %v1499 = vadd.f32 %v381, %v1498
      %v1500 = vpop.f32.mrf.mxu0
      %v1501 = vpop.f32.mrf.mxu0
      %v1502 = vadd.f32 %v381, %v1501
      %v1503 = vpop.f32.mrf.mxu0
      %1504 = vmatprep.mubr.bf16.mxu0 %v1114
      %1505 = vmatmul.mubr.bf16.gmra.mxu0 %v831
      %v1506 = vpop.f32.mrf.mxu0
      %v1507 = vadd.f32 %v381, %v1506
      %v1508 = vpop.f32.mrf.mxu0
      %v1509 = vpop.f32.mrf.mxu0
      %v1510 = vadd.f32 %v381, %v1509
      %v1511 = vpop.f32.mrf.mxu0
      %1512 = vmatprep.mubr.bf16.mxu0 %v1117
      %1513 = vmatmul.mubr.bf16.gmra.mxu0 %v833
      %v1514 = vpop.f32.mrf.mxu0
      %v1515 = vadd.f32 %v381, %v1514
      %v1516 = vpop.f32.mrf.mxu0
      %v1517 = vpop.f32.mrf.mxu0
      %v1518 = vadd.f32 %v381, %v1517
      %v1519 = vpop.f32.mrf.mxu0
      %1520 = vmatprep.mubr.bf16.mxu0 %v1120
      %1521 = vmatmul.mubr.bf16.gmra.mxu0 %v835
      %v1522 = vpop.f32.mrf.mxu0
      %v1523 = vadd.f32 %v381, %v1522
      %v1524 = vpop.f32.mrf.mxu0
      %v1525 = vpop.f32.mrf.mxu0
      %v1526 = vadd.f32 %v381, %v1525
      %v1527 = vpop.f32.mrf.mxu0
      %1528 = vmatprep.mubr.bf16.mxu0 %v1123
      %1529 = vmatmul.mubr.bf16.gmra.mxu0 %v837
      %v1530 = vpop.f32.mrf.mxu0
      %v1531 = vadd.f32 %v381, %v1530
      %v1532 = vpop.f32.mrf.mxu0
      %v1533 = vpop.f32.mrf.mxu0
      %v1534 = vadd.f32 %v381, %v1533
      %v1535 = vpop.f32.mrf.mxu0
      %1536 = vmatprep.mubr.bf16.mxu0 %v1126
      %1537 = vmatmul.mubr.bf16.gmra.mxu0 %v839
      %v1538 = vpop.f32.mrf.mxu0
      %v1539 = vadd.f32 %v381, %v1538
      %v1540 = vpop.f32.mrf.mxu0
      %v1541 = vpop.f32.mrf.mxu0
      %v1542 = vadd.f32 %v381, %v1541
      %v1543 = vpop.f32.mrf.mxu0
      %1544 = vmatprep.mubr.bf16.mxu0 %v1129
      %1545 = vmatmul.mubr.bf16.gmra.mxu0 %v841
      %v1546 = vpop.f32.mrf.mxu0
      %v1547 = vadd.f32 %v381, %v1546
      %v1548 = vpop.f32.mrf.mxu0
      %v1549 = vpop.f32.mrf.mxu0
      %v1550 = vadd.f32 %v381, %v1549
      %v1551 = vpop.f32.mrf.mxu0
      %1552 = vmatprep.mubr.bf16.mxu0 %v1132
      %1553 = vmatmul.mubr.bf16.gmra.mxu0 %v843
      %v1554 = vpop.f32.mrf.mxu0
      %v1555 = vadd.f32 %v381, %v1554
      %v1556 = vpop.f32.mrf.mxu0
      %v1557 = vpop.f32.mrf.mxu0
      %v1558 = vadd.f32 %v381, %v1557
      %v1559 = vpop.f32.mrf.mxu0
      %1560 = vmatprep.mubr.bf16.mxu0 %v1135
      %1561 = vmatmul.mubr.bf16.gmra.mxu0 %v845
      %v1562 = vpop.f32.mrf.mxu0
      %v1563 = vadd.f32 %v381, %v1562
      %v1564 = vpop.f32.mrf.mxu0
      %v1565 = vpop.f32.mrf.mxu0
      %v1566 = vadd.f32 %v381, %v1565
      %v1567 = vpop.f32.mrf.mxu0
      %1568 = vmatprep.mubr.bf16.mxu0 %v1138
      %1569 = vmatmul.mubr.bf16.gmra.mxu0 %v847
      %v1570 = vpop.f32.mrf.mxu0
      %v1571 = vadd.f32 %v381, %v1570
      %v1572 = vpop.f32.mrf.mxu0
      %v1573 = vpop.f32.mrf.mxu0
      %v1574 = vadd.f32 %v381, %v1573
      %v1575 = vpop.f32.mrf.mxu0
      %1576 = vmatprep.mubr.bf16.mxu0 %v1141
      %1577 = vmatmul.mubr.bf16.gmra.mxu0 %v849
      %v1578 = vpop.f32.mrf.mxu0
      %v1579 = vadd.f32 %v381, %v1578
      %v1580 = vpop.f32.mrf.mxu0
      %v1581 = vpop.f32.mrf.mxu0
      %v1582 = vadd.f32 %v381, %v1581
      %v1583 = vpop.f32.mrf.mxu0
      %1584 = vmatprep.mubr.bf16.mxu0 %v1144
      %1585 = vmatmul.mubr.bf16.gmra.mxu0 %v851
      %v1586 = vpop.f32.mrf.mxu0
      %v1587 = vadd.f32 %v381, %v1586
      %v1588 = vpop.f32.mrf.mxu0
      %v1589 = vpop.f32.mrf.mxu0
      %v1590 = vadd.f32 %v381, %v1589
      %v1591 = vpop.f32.mrf.mxu0
      %1592 = vmatprep.mubr.bf16.mxu0 %v1147
      %1593 = vmatmul.mubr.bf16.gmra.mxu0 %v853
      %v1594 = vpop.f32.mrf.mxu0
      %v1595 = vadd.f32 %v381, %v1594
      %v1596 = vpop.f32.mrf.mxu0
      %v1597 = vpop.f32.mrf.mxu0
      %v1598 = vadd.f32 %v381, %v1597
      %v1599 = vpop.f32.mrf.mxu0
      %1600 = vmatprep.mubr.bf16.mxu0 %v1150
      %1601 = vmatmul.mubr.bf16.gmra.mxu0 %v855
      %v1602 = vpop.f32.mrf.mxu0
      %v1603 = vadd.f32 %v381, %v1602
      %v1604 = vpop.f32.mrf.mxu0
      %v1605 = vpop.f32.mrf.mxu0
      %v1606 = vadd.f32 %v381, %v1605
      %v1607 = vpop.f32.mrf.mxu0
      %1608 = vmatprep.mubr.bf16.mxu0 %v1153
      %1609 = vmatmul.mubr.bf16.gmra.mxu0 %v857
      %v1610 = vpop.f32.mrf.mxu0
      %v1611 = vadd.f32 %v381, %v1610
      %v1612 = vpop.f32.mrf.mxu0
      %v1613 = vpop.f32.mrf.mxu0
      %v1614 = vadd.f32 %v381, %v1613
      %v1615 = vpop.f32.mrf.mxu0
      %1616 = vmatprep.mubr.bf16.mxu0 %v1156
      %1617 = vmatmul.mubr.bf16.gmra.mxu0 %v859
      %v1618 = vpop.f32.mrf.mxu0
      %v1619 = vadd.f32 %v381, %v1618
      %v1620 = vpop.f32.mrf.mxu0
      %v1621 = vpop.f32.mrf.mxu0
      %v1622 = vadd.f32 %v381, %v1621
      %v1623 = vpop.f32.mrf.mxu0
      %1624 = vmatprep.mubr.bf16.mxu0 %v1159
      %1625 = vmatmul.mubr.bf16.gmra.mxu0 %v861
      %v1626 = vpop.f32.mrf.mxu0
      %v1627 = vadd.f32 %v381, %v1626
      %v1628 = vpop.f32.mrf.mxu0
      %v1629 = vpop.f32.mrf.mxu0
      %v1630 = vadd.f32 %v381, %v1629
      %v1631 = vpop.f32.mrf.mxu0
      %1632 = vmatprep.mubr.bf16.mxu0 %v1162
      %1633 = vmatmul.mubr.bf16.gmra.mxu0 %v863
      %v1634 = vpop.f32.mrf.mxu0
      %v1635 = vadd.f32 %v381, %v1634
      %v1636 = vpop.f32.mrf.mxu0
      %v1637 = vpop.f32.mrf.mxu0
      %v1638 = vadd.f32 %v381, %v1637
      %v1639 = vpop.f32.mrf.mxu0
      %1640 = vmatprep.mubr.bf16.mxu0 %v1165
      %1641 = vmatmul.mubr.bf16.gmra.mxu0 %v865
      %v1642 = vpop.f32.mrf.mxu0
      %v1643 = vadd.f32 %v381, %v1642
      %v1644 = vpop.f32.mrf.mxu0
      %v1645 = vpop.f32.mrf.mxu0
      %v1646 = vadd.f32 %v381, %v1645
      %v1647 = vpop.f32.mrf.mxu0
      %1648 = vmatprep.mubr.bf16.mxu0 %v1168
      %1649 = vmatmul.mubr.bf16.gmra.mxu0 %v867
      %v1650 = vpop.f32.mrf.mxu0
      %v1651 = vadd.f32 %v381, %v1650
      %v1652 = vpop.f32.mrf.mxu0
      %v1653 = vpop.f32.mrf.mxu0
      %v1654 = vadd.f32 %v381, %v1653
      %v1655 = vpop.f32.mrf.mxu0
      %1656 = vmatprep.mubr.bf16.mxu0 %v1171
      %1657 = vmatmul.mubr.bf16.gmra.mxu0 %v869
      %v1658 = vpop.f32.mrf.mxu0
      %v1659 = vadd.f32 %v381, %v1658
      %v1660 = vpop.f32.mrf.mxu0
      %v1661 = vpop.f32.mrf.mxu0
      %v1662 = vadd.f32 %v381, %v1661
      %v1663 = vpop.f32.mrf.mxu0
      %1664 = vmatprep.mubr.bf16.mxu0 %v1174
      %1665 = vmatmul.mubr.bf16.gmra.mxu0 %v871
      %v1666 = vpop.f32.mrf.mxu0
      %v1667 = vadd.f32 %v381, %v1666
      %v1668 = vpop.f32.mrf.mxu0
      %v1669 = vpop.f32.mrf.mxu0
      %v1670 = vadd.f32 %v381, %v1669
      %v1671 = vpop.f32.mrf.mxu0
      %1672 = vmatprep.mubr.bf16.mxu0 %v1177
      %1673 = vmatmul.mubr.bf16.gmra.mxu0 %v873
      %v1674 = vpop.f32.mrf.mxu0
      %v1675 = vadd.f32 %v381, %v1674
      %v1676 = vpop.f32.mrf.mxu0
      %v1677 = vpop.f32.mrf.mxu0
      %v1678 = vadd.f32 %v381, %v1677
      %v1679 = vpop.f32.mrf.mxu0
      %1680 = vmatprep.mubr.bf16.mxu0 %v1180
      %1681 = vmatmul.mubr.bf16.gmra.mxu0 %v875
      %v1682 = vpop.f32.mrf.mxu0
      %v1683 = vadd.f32 %v381, %v1682
      %v1684 = vpop.f32.mrf.mxu0
      %v1685 = vpop.f32.mrf.mxu0
      %v1686 = vadd.f32 %v381, %v1685
      %v1687 = vpop.f32.mrf.mxu0
      %1688 = vmatprep.mubr.bf16.mxu0 %v1183
      %1689 = vmatmul.mubr.bf16.gmra.mxu0 %v877
      %v1690 = vpop.f32.mrf.mxu0
      %v1691 = vadd.f32 %v381, %v1690
      %v1692 = vpop.f32.mrf.mxu0
      %v1693 = vpop.f32.mrf.mxu0
      %v1694 = vadd.f32 %v381, %v1693
      %v1695 = vpop.f32.mrf.mxu0
      %1696 = vmatprep.mubr.bf16.mxu0 %v1186
      %1697 = vmatmul.mubr.bf16.gmra.mxu0 %v879
      %v1698 = vpop.f32.mrf.mxu0
      %v1699 = vadd.f32 %v381, %v1698
      %v1700 = vpop.f32.mrf.mxu0
      %v1701 = vpop.f32.mrf.mxu0
      %v1702 = vadd.f32 %v381, %v1701
      %v1703 = vpop.f32.mrf.mxu0
      %1704 = vmatprep.mubr.bf16.mxu0 %v1189
      %1705 = vmatmul.mubr.bf16.gmra.mxu0 %v881
      %v1706 = vpop.f32.mrf.mxu0
      %v1707 = vadd.f32 %v381, %v1706
      %v1708 = vpop.f32.mrf.mxu0
      %v1709 = vpop.f32.mrf.mxu0
      %v1710 = vadd.f32 %v381, %v1709
      %v1711 = vpop.f32.mrf.mxu0
      %1712 = vmatprep.mubr.bf16.mxu0 %v1192
      %1713 = vmatmul.mubr.bf16.gmra.mxu0 %v883
      %v1714 = vpop.f32.mrf.mxu0
      %v1715 = vadd.f32 %v381, %v1714
      %v1716 = vpop.f32.mrf.mxu0
      %v1717 = vpop.f32.mrf.mxu0
      %v1718 = vadd.f32 %v381, %v1717
      %v1719 = vpop.f32.mrf.mxu0
      %1720 = vmatprep.mubr.bf16.mxu0 %v1195
      %1721 = vmatmul.mubr.bf16.gmra.mxu0 %v885
      %v1722 = vpop.f32.mrf.mxu0
      %v1723 = vadd.f32 %v381, %v1722
      %v1724 = vpop.f32.mrf.mxu0
      %v1725 = vpop.f32.mrf.mxu0
      %v1726 = vadd.f32 %v381, %v1725
      %v1727 = vpop.f32.mrf.mxu0
      %1728 = vmatprep.mubr.bf16.mxu0 %v1198
      %1729 = vmatmul.mubr.bf16.gmra.mxu0 %v887
      %v1730 = vpop.f32.mrf.mxu0
      %v1731 = vadd.f32 %v381, %v1730
      %v1732 = vpop.f32.mrf.mxu0
      %v1733 = vpop.f32.mrf.mxu0
      %v1734 = vadd.f32 %v381, %v1733
      %v1735 = vpop.f32.mrf.mxu0
      %1736 = vmatprep.mubr.bf16.mxu0 %v1201
      %1737 = vmatmul.mubr.bf16.gmra.mxu0 %v889
      %v1738 = vpop.f32.mrf.mxu0
      %v1739 = vadd.f32 %v381, %v1738
      %v1740 = vpop.f32.mrf.mxu0
      %v1741 = vpop.f32.mrf.mxu0
      %v1742 = vadd.f32 %v381, %v1741
      %v1743 = vpop.f32.mrf.mxu0
      %1744 = vmatprep.mubr.bf16.mxu0 %v1204
      %1745 = vmatmul.mubr.bf16.gmra.mxu0 %v891
      %v1746 = vpop.f32.mrf.mxu0
      %v1747 = vadd.f32 %v381, %v1746
      %v1748 = vpop.f32.mrf.mxu0
      %v1749 = vpop.f32.mrf.mxu0
      %v1750 = vadd.f32 %v381, %v1749
      %v1751 = vpop.f32.mrf.mxu0
      %1752 = vmatprep.mubr.bf16.mxu0 %v1207
      %1753 = vmatmul.mubr.bf16.gmra.mxu0 %v893
      %v1754 = vpop.f32.mrf.mxu0
      %v1755 = vadd.f32 %v381, %v1754
      %v1756 = vpop.f32.mrf.mxu0
      %v1757 = vpop.f32.mrf.mxu0
      %v1758 = vadd.f32 %v381, %v1757
      %v1759 = vpop.f32.mrf.mxu0
      %1760 = vdwg.mxu0
      %v1761 = vmax.f32 %v1251, 0.0
      %v1762 = vmax.f32 %v1254, 0.0
      %v1763 = vmax.f32 %v1259, 0.0
      %v1764 = vmax.f32 %v1262, 0.0
      %v1765 = vmax.f32 %v1267, 0.0
      %v1766 = vmax.f32 %v1270, 0.0
      %v1767 = vmax.f32 %v1275, 0.0
      %v1768 = vmax.f32 %v1278, 0.0
      %v1769 = vmax.f32 %v1283, 0.0
      %v1770 = vmax.f32 %v1286, 0.0
      %v1771 = vmax.f32 %v1291, 0.0
      %v1772 = vmax.f32 %v1294, 0.0
      %v1773 = vmax.f32 %v1299, 0.0
      %v1774 = vmax.f32 %v1302, 0.0
      %v1775 = vmax.f32 %v1307, 0.0
      %v1776 = vmax.f32 %v1310, 0.0
      %v1777 = vmax.f32 %v1315, 0.0
      %v1778 = vmax.f32 %v1318, 0.0
      %v1779 = vmax.f32 %v1323, 0.0
      %v1780 = vmax.f32 %v1326, 0.0
      %v1781 = vmax.f32 %v1331, 0.0
      %v1782 = vmax.f32 %v1334, 0.0
      %v1783 = vmax.f32 %v1339, 0.0
      %v1784 = vmax.f32 %v1342, 0.0
      %v1785 = vmax.f32 %v1347, 0.0
      %v1786 = vmax.f32 %v1350, 0.0
      %v1787 = vmax.f32 %v1355, 0.0
      %v1788 = vmax.f32 %v1358, 0.0
      %v1789 = vmax.f32 %v1363, 0.0
      %v1790 = vmax.f32 %v1366, 0.0
      %v1791 = vmax.f32 %v1371, 0.0
      %v1792 = vmax.f32 %v1374, 0.0
      %v1793 = vmax.f32 %v1379, 0.0
      %v1794 = vmax.f32 %v1382, 0.0
      %v1795 = vmax.f32 %v1387, 0.0
      %v1796 = vmax.f32 %v1390, 0.0
      %v1797 = vmax.f32 %v1395, 0.0
      %v1798 = vmax.f32 %v1398, 0.0
      %v1799 = vmax.f32 %v1403, 0.0
      %v1800 = vmax.f32 %v1406, 0.0
      %v1801 = vmax.f32 %v1411, 0.0
      %v1802 = vmax.f32 %v1414, 0.0
      %v1803 = vmax.f32 %v1419, 0.0
      %v1804 = vmax.f32 %v1422, 0.0
      %v1805 = vmax.f32 %v1427, 0.0
      %v1806 = vmax.f32 %v1430, 0.0
      %v1807 = vmax.f32 %v1435, 0.0
      %v1808 = vmax.f32 %v1438, 0.0
      %v1809 = vmax.f32 %v1443, 0.0
      %v1810 = vmax.f32 %v1446, 0.0
      %v1811 = vmax.f32 %v1451, 0.0
      %v1812 = vmax.f32 %v1454, 0.0
      %v1813 = vmax.f32 %v1459, 0.0
      %v1814 = vmax.f32 %v1462, 0.0
      %v1815 = vmax.f32 %v1467, 0.0
      %v1816 = vmax.f32 %v1470, 0.0
      %v1817 = vmax.f32 %v1475, 0.0
      %v1818 = vmax.f32 %v1478, 0.0
      %v1819 = vmax.f32 %v1483, 0.0
      %v1820 = vmax.f32 %v1486, 0.0
      %v1821 = vmax.f32 %v1491, 0.0
      %v1822 = vmax.f32 %v1494, 0.0
      %v1823 = vmax.f32 %v1499, 0.0
      %v1824 = vmax.f32 %v1502, 0.0
      %v1825 = vmax.f32 %v1507, 0.0
      %v1826 = vmax.f32 %v1510, 0.0
      %v1827 = vmax.f32 %v1515, 0.0
      %v1828 = vmax.f32 %v1518, 0.0
      %v1829 = vmax.f32 %v1523, 0.0
      %v1830 = vmax.f32 %v1526, 0.0
      %v1831 = vmax.f32 %v1531, 0.0
      %v1832 = vmax.f32 %v1534, 0.0
      %v1833 = vmax.f32 %v1539, 0.0
      %v1834 = vmax.f32 %v1542, 0.0
      %v1835 = vmax.f32 %v1547, 0.0
      %v1836 = vmax.f32 %v1550, 0.0
      %v1837 = vmax.f32 %v1555, 0.0
      %v1838 = vmax.f32 %v1558, 0.0
      %v1839 = vmax.f32 %v1563, 0.0
      %v1840 = vmax.f32 %v1566, 0.0
      %v1841 = vmax.f32 %v1571, 0.0
      %v1842 = vmax.f32 %v1574, 0.0
      %v1843 = vmax.f32 %v1579, 0.0
      %v1844 = vmax.f32 %v1582, 0.0
      %v1845 = vmax.f32 %v1587, 0.0
      %v1846 = vmax.f32 %v1590, 0.0
      %v1847 = vmax.f32 %v1595, 0.0
      %v1848 = vmax.f32 %v1598, 0.0
      %v1849 = vmax.f32 %v1603, 0.0
      %v1850 = vmax.f32 %v1606, 0.0
      %v1851 = vmax.f32 %v1611, 0.0
      %v1852 = vmax.f32 %v1614, 0.0
      %v1853 = vmax.f32 %v1619, 0.0
      %v1854 = vmax.f32 %v1622, 0.0
      %v1855 = vmax.f32 %v1627, 0.0
      %v1856 = vmax.f32 %v1630, 0.0
      %v1857 = vmax.f32 %v1635, 0.0
      %v1858 = vmax.f32 %v1638, 0.0
      %v1859 = vmax.f32 %v1643, 0.0
      %v1860 = vmax.f32 %v1646, 0.0
      %v1861 = vmax.f32 %v1651, 0.0
      %v1862 = vmax.f32 %v1654, 0.0
      %v1863 = vmax.f32 %v1659, 0.0
      %v1864 = vmax.f32 %v1662, 0.0
      %v1865 = vmax.f32 %v1667, 0.0
      %v1866 = vmax.f32 %v1670, 0.0
      %v1867 = vmax.f32 %v1675, 0.0
      %v1868 = vmax.f32 %v1678, 0.0
      %v1869 = vmax.f32 %v1683, 0.0
      %v1870 = vmax.f32 %v1686, 0.0
      %v1871 = vmax.f32 %v1691, 0.0
      %v1872 = vmax.f32 %v1694, 0.0
      %v1873 = vmax.f32 %v1699, 0.0
      %v1874 = vmax.f32 %v1702, 0.0
      %v1875 = vmax.f32 %v1707, 0.0
      %v1876 = vmax.f32 %v1710, 0.0
      %v1877 = vmax.f32 %v1715, 0.0
      %v1878 = vmax.f32 %v1718, 0.0
      %v1879 = vmax.f32 %v1723, 0.0
      %v1880 = vmax.f32 %v1726, 0.0
      %v1881 = vmax.f32 %v1731, 0.0
      %v1882 = vmax.f32 %v1734, 0.0
      %v1883 = vmax.f32 %v1739, 0.0
      %v1884 = vmax.f32 %v1742, 0.0
      %v1885 = vmax.f32 %v1747, 0.0
      %v1886 = vmax.f32 %v1750, 0.0
      %v1887 = vmax.f32 %v1755, 0.0
      %v1888 = vmax.f32 %v1758, 0.0
      %v1889 = vpack.c.bf16 %v1762, %v1761
      %v1890 = vpack.c.bf16 %v1764, %v1763
      %v1891 = vpack.c.bf16 %v1766, %v1765
      %v1892 = vpack.c.bf16 %v1768, %v1767
      %v1893 = vpack.c.bf16 %v1770, %v1769
      %v1894 = vpack.c.bf16 %v1772, %v1771
      %v1895 = vpack.c.bf16 %v1774, %v1773
      %v1896 = vpack.c.bf16 %v1776, %v1775
      %v1897 = vpack.c.bf16 %v1778, %v1777
      %v1898 = vpack.c.bf16 %v1780, %v1779
      %v1899 = vpack.c.bf16 %v1782, %v1781
      %v1900 = vpack.c.bf16 %v1784, %v1783
      %v1901 = vpack.c.bf16 %v1786, %v1785
      %v1902 = vpack.c.bf16 %v1788, %v1787
      %v1903 = vpack.c.bf16 %v1790, %v1789
      %v1904 = vpack.c.bf16 %v1792, %v1791
      %v1905 = vpack.c.bf16 %v1794, %v1793
      %v1906 = vpack.c.bf16 %v1796, %v1795
      %v1907 = vpack.c.bf16 %v1798, %v1797
      %v1908 = vpack.c.bf16 %v1800, %v1799
      %v1909 = vpack.c.bf16 %v1802, %v1801
      %v1910 = vpack.c.bf16 %v1804, %v1803
      %v1911 = vpack.c.bf16 %v1806, %v1805
      %v1912 = vpack.c.bf16 %v1808, %v1807
      %v1913 = vpack.c.bf16 %v1810, %v1809
      %v1914 = vpack.c.bf16 %v1812, %v1811
      %v1915 = vpack.c.bf16 %v1814, %v1813
      %v1916 = vpack.c.bf16 %v1816, %v1815
      %v1917 = vpack.c.bf16 %v1818, %v1817
      %v1918 = vpack.c.bf16 %v1820, %v1819
      %v1919 = vpack.c.bf16 %v1822, %v1821
      %v1920 = vpack.c.bf16 %v1824, %v1823
      %v1921 = vpack.c.bf16 %v1826, %v1825
      %v1922 = vpack.c.bf16 %v1828, %v1827
      %v1923 = vpack.c.bf16 %v1830, %v1829
      %v1924 = vpack.c.bf16 %v1832, %v1831
      %v1925 = vpack.c.bf16 %v1834, %v1833
      %v1926 = vpack.c.bf16 %v1836, %v1835
      %v1927 = vpack.c.bf16 %v1838, %v1837
      %v1928 = vpack.c.bf16 %v1840, %v1839
      %v1929 = vpack.c.bf16 %v1842, %v1841
      %v1930 = vpack.c.bf16 %v1844, %v1843
      %v1931 = vpack.c.bf16 %v1846, %v1845
      %v1932 = vpack.c.bf16 %v1848, %v1847
      %v1933 = vpack.c.bf16 %v1850, %v1849
      %v1934 = vpack.c.bf16 %v1852, %v1851
      %v1935 = vpack.c.bf16 %v1854, %v1853
      %v1936 = vpack.c.bf16 %v1856, %v1855
      %v1937 = vpack.c.bf16 %v1858, %v1857
      %v1938 = vpack.c.bf16 %v1860, %v1859
      %v1939 = vpack.c.bf16 %v1862, %v1861
      %v1940 = vpack.c.bf16 %v1864, %v1863
      %v1941 = vpack.c.bf16 %v1866, %v1865
      %v1942 = vpack.c.bf16 %v1868, %v1867
      %v1943 = vpack.c.bf16 %v1870, %v1869
      %v1944 = vpack.c.bf16 %v1872, %v1871
      %v1945 = vpack.c.bf16 %v1874, %v1873
      %v1946 = vpack.c.bf16 %v1876, %v1875
      %v1947 = vpack.c.bf16 %v1878, %v1877
      %v1948 = vpack.c.bf16 %v1880, %v1879
      %v1949 = vpack.c.bf16 %v1882, %v1881
      %v1950 = vpack.c.bf16 %v1884, %v1883
      %v1951 = vpack.c.bf16 %v1886, %v1885
      %v1952 = vpack.c.bf16 %v1888, %v1887
      %v2017 = vunpack.c.l.b16 %v1889
      %v2018 = vunpack.c.h.b16 %v1889
      %v2019 = vunpack.c.l.b16 %v1890
      %v2020 = vunpack.c.h.b16 %v1890
      %v2021 = vunpack.c.l.b16 %v1891
      %v2022 = vunpack.c.h.b16 %v1891
      %v2023 = vunpack.c.l.b16 %v1892
      %v2024 = vunpack.c.h.b16 %v1892
      %v2025 = vunpack.c.l.b16 %v1893
      %v2026 = vunpack.c.h.b16 %v1893
      %v2027 = vunpack.c.l.b16 %v1894
      %v2028 = vunpack.c.h.b16 %v1894
      %v2029 = vunpack.c.l.b16 %v1895
      %v2030 = vunpack.c.h.b16 %v1895
      %v2031 = vunpack.c.l.b16 %v1896
      %v2032 = vunpack.c.h.b16 %v1896
      %v2033 = vunpack.c.l.b16 %v1897
      %v2034 = vunpack.c.h.b16 %v1897
      %v2035 = vunpack.c.l.b16 %v1898
      %v2036 = vunpack.c.h.b16 %v1898
      %v2037 = vunpack.c.l.b16 %v1899
      %v2038 = vunpack.c.h.b16 %v1899
      %v2039 = vunpack.c.l.b16 %v1900
      %v2040 = vunpack.c.h.b16 %v1900
      %v2041 = vunpack.c.l.b16 %v1901
      %v2042 = vunpack.c.h.b16 %v1901
      %v2043 = vunpack.c.l.b16 %v1902
      %v2044 = vunpack.c.h.b16 %v1902
      %v2045 = vunpack.c.l.b16 %v1903
      %v2046 = vunpack.c.h.b16 %v1903
      %v2047 = vunpack.c.l.b16 %v1904
      %v2048 = vunpack.c.h.b16 %v1904
      %v2049 = vunpack.c.l.b16 %v1905
      %v2050 = vunpack.c.h.b16 %v1905
      %v2051 = vunpack.c.l.b16 %v1906
      %v2052 = vunpack.c.h.b16 %v1906
      %v2053 = vunpack.c.l.b16 %v1907
      %v2054 = vunpack.c.h.b16 %v1907
      %v2055 = vunpack.c.l.b16 %v1908
      %v2056 = vunpack.c.h.b16 %v1908
      %v2057 = vunpack.c.l.b16 %v1909
      %v2058 = vunpack.c.h.b16 %v1909
      %v2059 = vunpack.c.l.b16 %v1910
      %v2060 = vunpack.c.h.b16 %v1910
      %v2061 = vunpack.c.l.b16 %v1911
      %v2062 = vunpack.c.h.b16 %v1911
      %v2063 = vunpack.c.l.b16 %v1912
      %v2064 = vunpack.c.h.b16 %v1912
      %v2065 = vunpack.c.l.b16 %v1913
      %v2066 = vunpack.c.h.b16 %v1913
      %v2067 = vunpack.c.l.b16 %v1914
      %v2068 = vunpack.c.h.b16 %v1914
      %v2069 = vunpack.c.l.b16 %v1915
      %v2070 = vunpack.c.h.b16 %v1915
      %v2071 = vunpack.c.l.b16 %v1916
      %v2072 = vunpack.c.h.b16 %v1916
      %v2073 = vunpack.c.l.b16 %v1917
      %v2074 = vunpack.c.h.b16 %v1917
      %v2075 = vunpack.c.l.b16 %v1918
      %v2076 = vunpack.c.h.b16 %v1918
      %v2077 = vunpack.c.l.b16 %v1919
      %v2078 = vunpack.c.h.b16 %v1919
      %v2079 = vunpack.c.l.b16 %v1920
      %v2080 = vunpack.c.h.b16 %v1920
      %v2081 = vunpack.c.l.b16 %v1921
      %v2082 = vunpack.c.h.b16 %v1921
      %v2083 = vunpack.c.l.b16 %v1922
      %v2084 = vunpack.c.h.b16 %v1922
      %v2085 = vunpack.c.l.b16 %v1923
      %v2086 = vunpack.c.h.b16 %v1923
      %v2087 = vunpack.c.l.b16 %v1924
      %v2088 = vunpack.c.h.b16 %v1924
      %v2089 = vunpack.c.l.b16 %v1925
      %v2090 = vunpack.c.h.b16 %v1925
      %v2091 = vunpack.c.l.b16 %v1926
      %v2092 = vunpack.c.h.b16 %v1926
      %v2093 = vunpack.c.l.b16 %v1927
      %v2094 = vunpack.c.h.b16 %v1927
      %v2095 = vunpack.c.l.b16 %v1928
      %v2096 = vunpack.c.h.b16 %v1928
      %v2097 = vunpack.c.l.b16 %v1929
      %v2098 = vunpack.c.h.b16 %v1929
      %v2099 = vunpack.c.l.b16 %v1930
      %v2100 = vunpack.c.h.b16 %v1930
      %v2101 = vunpack.c.l.b16 %v1931
      %v2102 = vunpack.c.h.b16 %v1931
      %v2103 = vunpack.c.l.b16 %v1932
      %v2104 = vunpack.c.h.b16 %v1932
      %v2105 = vunpack.c.l.b16 %v1933
      %v2106 = vunpack.c.h.b16 %v1933
      %v2107 = vunpack.c.l.b16 %v1934
      %v2108 = vunpack.c.h.b16 %v1934
      %v2109 = vunpack.c.l.b16 %v1935
      %v2110 = vunpack.c.h.b16 %v1935
      %v2111 = vunpack.c.l.b16 %v1936
      %v2112 = vunpack.c.h.b16 %v1936
      %v2113 = vunpack.c.l.b16 %v1937
      %v2114 = vunpack.c.h.b16 %v1937
      %v2115 = vunpack.c.l.b16 %v1938
      %v2116 = vunpack.c.h.b16 %v1938
      %v2117 = vunpack.c.l.b16 %v1939
      %v2118 = vunpack.c.h.b16 %v1939
      %v2119 = vunpack.c.l.b16 %v1940
      %v2120 = vunpack.c.h.b16 %v1940
      %v2121 = vunpack.c.l.b16 %v1941
      %v2122 = vunpack.c.h.b16 %v1941
      %v2123 = vunpack.c.l.b16 %v1942
      %v2124 = vunpack.c.h.b16 %v1942
      %v2125 = vunpack.c.l.b16 %v1943
      %v2126 = vunpack.c.h.b16 %v1943
      %v2127 = vunpack.c.l.b16 %v1944
      %v2128 = vunpack.c.h.b16 %v1944
      %v2129 = vunpack.c.l.b16 %v1945
      %v2130 = vunpack.c.h.b16 %v1945
      %v2131 = vunpack.c.l.b16 %v1946
      %v2132 = vunpack.c.h.b16 %v1946
      %v2133 = vunpack.c.l.b16 %v1947
      %v2134 = vunpack.c.h.b16 %v1947
      %v2135 = vunpack.c.l.b16 %v1948
      %v2136 = vunpack.c.h.b16 %v1948
      %v2137 = vunpack.c.l.b16 %v1949
      %v2138 = vunpack.c.h.b16 %v1949
      %v2139 = vunpack.c.l.b16 %v1950
      %v2140 = vunpack.c.h.b16 %v1950
      %v2141 = vunpack.c.l.b16 %v1951
      %v2142 = vunpack.c.h.b16 %v1951
      %v2143 = vunpack.c.l.b16 %v1952
      %v2144 = vunpack.c.h.b16 %v1952
      %v2145 = vpack.c.b16 %v2017, %v2017
      %v2146 = vpack.c.b16 %v2018, %v2018
      %v2147 = vpack.c.b16 %v2019, %v2019
      %v2148 = vpack.c.b16 %v2020, %v2020
      %v2149 = vpack.c.b16 %v2021, %v2021
      %v2150 = vpack.c.b16 %v2022, %v2022
      %v2151 = vpack.c.b16 %v2023, %v2023
      %v2152 = vpack.c.b16 %v2024, %v2024
      %v2153 = vpack.c.b16 %v2025, %v2025
      %v2154 = vpack.c.b16 %v2026, %v2026
      %v2155 = vpack.c.b16 %v2027, %v2027
      %v2156 = vpack.c.b16 %v2028, %v2028
      %v2157 = vpack.c.b16 %v2029, %v2029
      %v2158 = vpack.c.b16 %v2030, %v2030
      %v2159 = vpack.c.b16 %v2031, %v2031
      %v2160 = vpack.c.b16 %v2032, %v2032
      %v2161 = vpack.c.b16 %v2033, %v2033
      %v2162 = vpack.c.b16 %v2034, %v2034
      %v2163 = vpack.c.b16 %v2035, %v2035
      %v2164 = vpack.c.b16 %v2036, %v2036
      %v2165 = vpack.c.b16 %v2037, %v2037
      %v2166 = vpack.c.b16 %v2038, %v2038
      %v2167 = vpack.c.b16 %v2039, %v2039
      %v2168 = vpack.c.b16 %v2040, %v2040
      %v2169 = vpack.c.b16 %v2041, %v2041
      %v2170 = vpack.c.b16 %v2042, %v2042
      %v2171 = vpack.c.b16 %v2043, %v2043
      %v2172 = vpack.c.b16 %v2044, %v2044
      %v2173 = vpack.c.b16 %v2045, %v2045
      %v2174 = vpack.c.b16 %v2046, %v2046
      %v2175 = vpack.c.b16 %v2047, %v2047
      %v2176 = vpack.c.b16 %v2048, %v2048
      %v2177 = vpack.c.b16 %v2049, %v2049
      %v2178 = vpack.c.b16 %v2050, %v2050
      %v2179 = vpack.c.b16 %v2051, %v2051
      %v2180 = vpack.c.b16 %v2052, %v2052
      %v2181 = vpack.c.b16 %v2053, %v2053
      %v2182 = vpack.c.b16 %v2054, %v2054
      %v2183 = vpack.c.b16 %v2055, %v2055
      %v2184 = vpack.c.b16 %v2056, %v2056
      %v2185 = vpack.c.b16 %v2057, %v2057
      %v2186 = vpack.c.b16 %v2058, %v2058
      %v2187 = vpack.c.b16 %v2059, %v2059
      %v2188 = vpack.c.b16 %v2060, %v2060
      %v2189 = vpack.c.b16 %v2061, %v2061
      %v2190 = vpack.c.b16 %v2062, %v2062
      %v2191 = vpack.c.b16 %v2063, %v2063
      %v2192 = vpack.c.b16 %v2064, %v2064
      %v2193 = vpack.c.b16 %v2065, %v2065
      %v2194 = vpack.c.b16 %v2066, %v2066
      %v2195 = vpack.c.b16 %v2067, %v2067
      %v2196 = vpack.c.b16 %v2068, %v2068
      %v2197 = vpack.c.b16 %v2069, %v2069
      %v2198 = vpack.c.b16 %v2070, %v2070
      %v2199 = vpack.c.b16 %v2071, %v2071
      %v2200 = vpack.c.b16 %v2072, %v2072
      %v2201 = vpack.c.b16 %v2073, %v2073
      %v2202 = vpack.c.b16 %v2074, %v2074
      %v2203 = vpack.c.b16 %v2075, %v2075
      %v2204 = vpack.c.b16 %v2076, %v2076
      %v2205 = vpack.c.b16 %v2077, %v2077
      %v2206 = vpack.c.b16 %v2078, %v2078
      %v2207 = vpack.c.b16 %v2079, %v2079
      %v2208 = vpack.c.b16 %v2080, %v2080
      %v2209 = vpack.c.b16 %v2081, %v2081
      %v2210 = vpack.c.b16 %v2082, %v2082
      %v2211 = vpack.c.b16 %v2083, %v2083
      %v2212 = vpack.c.b16 %v2084, %v2084
      %v2213 = vpack.c.b16 %v2085, %v2085
      %v2214 = vpack.c.b16 %v2086, %v2086
      %v2215 = vpack.c.b16 %v2087, %v2087
      %v2216 = vpack.c.b16 %v2088, %v2088
      %v2217 = vpack.c.b16 %v2089, %v2089
      %v2218 = vpack.c.b16 %v2090, %v2090
      %v2219 = vpack.c.b16 %v2091, %v2091
      %v2220 = vpack.c.b16 %v2092, %v2092
      %v2221 = vpack.c.b16 %v2093, %v2093
      %v2222 = vpack.c.b16 %v2094, %v2094
      %v2223 = vpack.c.b16 %v2095, %v2095
      %v2224 = vpack.c.b16 %v2096, %v2096
      %v2225 = vpack.c.b16 %v2097, %v2097
      %v2226 = vpack.c.b16 %v2098, %v2098
      %v2227 = vpack.c.b16 %v2099, %v2099
      %v2228 = vpack.c.b16 %v2100, %v2100
      %v2229 = vpack.c.b16 %v2101, %v2101
      %v2230 = vpack.c.b16 %v2102, %v2102
      %v2231 = vpack.c.b16 %v2103, %v2103
      %v2232 = vpack.c.b16 %v2104, %v2104
      %v2233 = vpack.c.b16 %v2105, %v2105
      %v2234 = vpack.c.b16 %v2106, %v2106
      %v2235 = vpack.c.b16 %v2107, %v2107
      %v2236 = vpack.c.b16 %v2108, %v2108
      %v2237 = vpack.c.b16 %v2109, %v2109
      %v2238 = vpack.c.b16 %v2110, %v2110
      %v2239 = vpack.c.b16 %v2111, %v2111
      %v2240 = vpack.c.b16 %v2112, %v2112
      %v2241 = vpack.c.b16 %v2113, %v2113
      %v2242 = vpack.c.b16 %v2114, %v2114
      %v2243 = vpack.c.b16 %v2115, %v2115
      %v2244 = vpack.c.b16 %v2116, %v2116
      %v2245 = vpack.c.b16 %v2117, %v2117
      %v2246 = vpack.c.b16 %v2118, %v2118
      %v2247 = vpack.c.b16 %v2119, %v2119
      %v2248 = vpack.c.b16 %v2120, %v2120
      %v2249 = vpack.c.b16 %v2121, %v2121
      %v2250 = vpack.c.b16 %v2122, %v2122
      %v2251 = vpack.c.b16 %v2123, %v2123
      %v2252 = vpack.c.b16 %v2124, %v2124
      %v2253 = vpack.c.b16 %v2125, %v2125
      %v2254 = vpack.c.b16 %v2126, %v2126
      %v2255 = vpack.c.b16 %v2127, %v2127
      %v2256 = vpack.c.b16 %v2128, %v2128
      %v2257 = vpack.c.b16 %v2129, %v2129
      %v2258 = vpack.c.b16 %v2130, %v2130
      %v2259 = vpack.c.b16 %v2131, %v2131
      %v2260 = vpack.c.b16 %v2132, %v2132
      %v2261 = vpack.c.b16 %v2133, %v2133
      %v2262 = vpack.c.b16 %v2134, %v2134
      %v2263 = vpack.c.b16 %v2135, %v2135
      %v2264 = vpack.c.b16 %v2136, %v2136
      %v2265 = vpack.c.b16 %v2137, %v2137
      %v2266 = vpack.c.b16 %v2138, %v2138
      %v2267 = vpack.c.b16 %v2139, %v2139
      %v2268 = vpack.c.b16 %v2140, %v2140
      %v2269 = vpack.c.b16 %v2141, %v2141
      %v2270 = vpack.c.b16 %v2142, %v2142
      %v2271 = vpack.c.b16 %v2143, %v2143
      %v2272 = vpack.c.b16 %v2144, %v2144
      %vm2401 = vcmask 519168
      %2402 = vst.msk [vmem:[%s226] sm:$0xf] %vm2401, %v2145
      %2403 = vst.msk [vmem:[%s226 + $0x4] sm:$0xf] %vm2401, %v2146
      %2404 = vst.msk [vmem:[%s226 + $0x8] sm:$0xf] %vm2401, %v2147
      %2405 = vst.msk [vmem:[%s226 + $0xc] sm:$0xf] %vm2401, %v2148
      %2406 = vst.msk [vmem:[%s226 + $0x10] sm:$0xf] %vm2401, %v2149
      %2407 = vst.msk [vmem:[%s226 + $0x14] sm:$0xf] %vm2401, %v2150
      %2408 = vst.msk [vmem:[%s226 + $0x18] sm:$0xf] %vm2401, %v2151
      %2409 = vst.msk [vmem:[%s226 + $0x1c] sm:$0xf] %vm2401, %v2152
      %2410 = vst.msk [vmem:[%s226 + $0x20] sm:$0xf] %vm2401, %v2153
      %2411 = vst.msk [vmem:[%s226 + $0x24] sm:$0xf] %vm2401, %v2154
      %2412 = vst.msk [vmem:[%s226 + $0x28] sm:$0xf] %vm2401, %v2155
      %2413 = vst.msk [vmem:[%s226 + $0x2c] sm:$0xf] %vm2401, %v2156
      %2414 = vst.msk [vmem:[%s226 + $0x30] sm:$0xf] %vm2401, %v2157
      %2415 = vst.msk [vmem:[%s226 + $0x34] sm:$0xf] %vm2401, %v2158
      %2416 = vst.msk [vmem:[%s226 + $0x38] sm:$0xf] %vm2401, %v2159
      %2417 = vst.msk [vmem:[%s226 + $0x3c] sm:$0xf] %vm2401, %v2160
      %2418 = vst.msk [vmem:[%s226 + $0x40] sm:$0xf] %vm2401, %v2161
      %2419 = vst.msk [vmem:[%s226 + $0x44] sm:$0xf] %vm2401, %v2162
      %2420 = vst.msk [vmem:[%s226 + $0x48] sm:$0xf] %vm2401, %v2163
      %2421 = vst.msk [vmem:[%s226 + $0x4c] sm:$0xf] %vm2401, %v2164
      %2422 = vst.msk [vmem:[%s226 + $0x50] sm:$0xf] %vm2401, %v2165
      %2423 = vst.msk [vmem:[%s226 + $0x54] sm:$0xf] %vm2401, %v2166
      %2424 = vst.msk [vmem:[%s226 + $0x58] sm:$0xf] %vm2401, %v2167
      %2425 = vst.msk [vmem:[%s226 + $0x5c] sm:$0xf] %vm2401, %v2168
      %2426 = vst.msk [vmem:[%s226 + $0x60] sm:$0xf] %vm2401, %v2169
      %2427 = vst.msk [vmem:[%s226 + $0x64] sm:$0xf] %vm2401, %v2170
      %2428 = vst.msk [vmem:[%s226 + $0x68] sm:$0xf] %vm2401, %v2171
      %2429 = vst.msk [vmem:[%s226 + $0x6c] sm:$0xf] %vm2401, %v2172
      %2430 = vst.msk [vmem:[%s226 + $0x70] sm:$0xf] %vm2401, %v2173
      %2431 = vst.msk [vmem:[%s226 + $0x74] sm:$0xf] %vm2401, %v2174
      %2432 = vst.msk [vmem:[%s226 + $0x78] sm:$0xf] %vm2401, %v2175
      %2433 = vst.msk [vmem:[%s226 + $0x7c] sm:$0xf] %vm2401, %v2176
      %2434 = vst.msk [vmem:[%s226 + $0x80] sm:$0xf] %vm2401, %v2177
      %2435 = vst.msk [vmem:[%s226 + $0x84] sm:$0xf] %vm2401, %v2178
      %2436 = vst.msk [vmem:[%s226 + $0x88] sm:$0xf] %vm2401, %v2179
      %2437 = vst.msk [vmem:[%s226 + $0x8c] sm:$0xf] %vm2401, %v2180
      %2438 = vst.msk [vmem:[%s226 + $0x90] sm:$0xf] %vm2401, %v2181
      %2439 = vst.msk [vmem:[%s226 + $0x94] sm:$0xf] %vm2401, %v2182
      %2440 = vst.msk [vmem:[%s226 + $0x98] sm:$0xf] %vm2401, %v2183
      %2441 = vst.msk [vmem:[%s226 + $0x9c] sm:$0xf] %vm2401, %v2184
      %2442 = vst.msk [vmem:[%s226 + $0xa0] sm:$0xf] %vm2401, %v2185
      %2443 = vst.msk [vmem:[%s226 + $0xa4] sm:$0xf] %vm2401, %v2186
      %2444 = vst.msk [vmem:[%s226 + $0xa8] sm:$0xf] %vm2401, %v2187
      %2445 = vst.msk [vmem:[%s226 + $0xac] sm:$0xf] %vm2401, %v2188
      %2446 = vst.msk [vmem:[%s226 + $0xb0] sm:$0xf] %vm2401, %v2189
      %2447 = vst.msk [vmem:[%s226 + $0xb4] sm:$0xf] %vm2401, %v2190
      %2448 = vst.msk [vmem:[%s226 + $0xb8] sm:$0xf] %vm2401, %v2191
      %2449 = vst.msk [vmem:[%s226 + $0xbc] sm:$0xf] %vm2401, %v2192
      %2450 = vst.msk [vmem:[%s226 + $0xc0] sm:$0xf] %vm2401, %v2193
      %2451 = vst.msk [vmem:[%s226 + $0xc4] sm:$0xf] %vm2401, %v2194
      %2452 = vst.msk [vmem:[%s226 + $0xc8] sm:$0xf] %vm2401, %v2195
      %2453 = vst.msk [vmem:[%s226 + $0xcc] sm:$0xf] %vm2401, %v2196
      %2454 = vst.msk [vmem:[%s226 + $0xd0] sm:$0xf] %vm2401, %v2197
      %2455 = vst.msk [vmem:[%s226 + $0xd4] sm:$0xf] %vm2401, %v2198
      %2456 = vst.msk [vmem:[%s226 + $0xd8] sm:$0xf] %vm2401, %v2199
      %2457 = vst.msk [vmem:[%s226 + $0xdc] sm:$0xf] %vm2401, %v2200
      %2458 = vst.msk [vmem:[%s226 + $0xe0] sm:$0xf] %vm2401, %v2201
      %2459 = vst.msk [vmem:[%s226 + $0xe4] sm:$0xf] %vm2401, %v2202
      %2460 = vst.msk [vmem:[%s226 + $0xe8] sm:$0xf] %vm2401, %v2203
      %2461 = vst.msk [vmem:[%s226 + $0xec] sm:$0xf] %vm2401, %v2204
      %2462 = vst.msk [vmem:[%s226 + $0xf0] sm:$0xf] %vm2401, %v2205
      %2463 = vst.msk [vmem:[%s226 + $0xf4] sm:$0xf] %vm2401, %v2206
      %2464 = vst.msk [vmem:[%s226 + $0xf8] sm:$0xf] %vm2401, %v2207
      %2465 = vst.msk [vmem:[%s226 + $0xfc] sm:$0xf] %vm2401, %v2208
      %2466 = vst.msk [vmem:[%s226 + $0x100] sm:$0xf] %vm2401, %v2209
      %2467 = vst.msk [vmem:[%s226 + $0x104] sm:$0xf] %vm2401, %v2210
      %2468 = vst.msk [vmem:[%s226 + $0x108] sm:$0xf] %vm2401, %v2211
      %2469 = vst.msk [vmem:[%s226 + $0x10c] sm:$0xf] %vm2401, %v2212
      %2470 = vst.msk [vmem:[%s226 + $0x110] sm:$0xf] %vm2401, %v2213
      %2471 = vst.msk [vmem:[%s226 + $0x114] sm:$0xf] %vm2401, %v2214
      %2472 = vst.msk [vmem:[%s226 + $0x118] sm:$0xf] %vm2401, %v2215
      %2473 = vst.msk [vmem:[%s226 + $0x11c] sm:$0xf] %vm2401, %v2216
      %2474 = vst.msk [vmem:[%s226 + $0x120] sm:$0xf] %vm2401, %v2217
      %2475 = vst.msk [vmem:[%s226 + $0x124] sm:$0xf] %vm2401, %v2218
      %2476 = vst.msk [vmem:[%s226 + $0x128] sm:$0xf] %vm2401, %v2219
      %2477 = vst.msk [vmem:[%s226 + $0x12c] sm:$0xf] %vm2401, %v2220
      %2478 = vst.msk [vmem:[%s226 + $0x130] sm:$0xf] %vm2401, %v2221
      %2479 = vst.msk [vmem:[%s226 + $0x134] sm:$0xf] %vm2401, %v2222
      %2480 = vst.msk [vmem:[%s226 + $0x138] sm:$0xf] %vm2401, %v2223
      %2481 = vst.msk [vmem:[%s226 + $0x13c] sm:$0xf] %vm2401, %v2224
      %2482 = vst.msk [vmem:[%s226 + $0x140] sm:$0xf] %vm2401, %v2225
      %2483 = vst.msk [vmem:[%s226 + $0x144] sm:$0xf] %vm2401, %v2226
      %2484 = vst.msk [vmem:[%s226 + $0x148] sm:$0xf] %vm2401, %v2227
      %2485 = vst.msk [vmem:[%s226 + $0x14c] sm:$0xf] %vm2401, %v2228
      %2486 = vst.msk [vmem:[%s226 + $0x150] sm:$0xf] %vm2401, %v2229
      %2487 = vst.msk [vmem:[%s226 + $0x154] sm:$0xf] %vm2401, %v2230
      %2488 = vst.msk [vmem:[%s226 + $0x158] sm:$0xf] %vm2401, %v2231
      %2489 = vst.msk [vmem:[%s226 + $0x15c] sm:$0xf] %vm2401, %v2232
      %2490 = vst.msk [vmem:[%s226 + $0x160] sm:$0xf] %vm2401, %v2233
      %2491 = vst.msk [vmem:[%s226 + $0x164] sm:$0xf] %vm2401, %v2234
      %2492 = vst.msk [vmem:[%s226 + $0x168] sm:$0xf] %vm2401, %v2235
      %2493 = vst.msk [vmem:[%s226 + $0x16c] sm:$0xf] %vm2401, %v2236
      %2494 = vst.msk [vmem:[%s226 + $0x170] sm:$0xf] %vm2401, %v2237
      %2495 = vst.msk [vmem:[%s226 + $0x174] sm:$0xf] %vm2401, %v2238
      %2496 = vst.msk [vmem:[%s226 + $0x178] sm:$0xf] %vm2401, %v2239
      %2497 = vst.msk [vmem:[%s226 + $0x17c] sm:$0xf] %vm2401, %v2240
      %2498 = vst.msk [vmem:[%s226 + $0x180] sm:$0xf] %vm2401, %v2241
      %2499 = vst.msk [vmem:[%s226 + $0x184] sm:$0xf] %vm2401, %v2242
      %2500 = vst.msk [vmem:[%s226 + $0x188] sm:$0xf] %vm2401, %v2243
      %2501 = vst.msk [vmem:[%s226 + $0x18c] sm:$0xf] %vm2401, %v2244
      %2502 = vst.msk [vmem:[%s226 + $0x190] sm:$0xf] %vm2401, %v2245
      %2503 = vst.msk [vmem:[%s226 + $0x194] sm:$0xf] %vm2401, %v2246
      %2504 = vst.msk [vmem:[%s226 + $0x198] sm:$0xf] %vm2401, %v2247
      %2505 = vst.msk [vmem:[%s226 + $0x19c] sm:$0xf] %vm2401, %v2248
      %2506 = vst.msk [vmem:[%s226 + $0x1a0] sm:$0xf] %vm2401, %v2249
      %2507 = vst.msk [vmem:[%s226 + $0x1a4] sm:$0xf] %vm2401, %v2250
      %2508 = vst.msk [vmem:[%s226 + $0x1a8] sm:$0xf] %vm2401, %v2251
      %2509 = vst.msk [vmem:[%s226 + $0x1ac] sm:$0xf] %vm2401, %v2252
      %2510 = vst.msk [vmem:[%s226 + $0x1b0] sm:$0xf] %vm2401, %v2253
      %2511 = vst.msk [vmem:[%s226 + $0x1b4] sm:$0xf] %vm2401, %v2254
      %2512 = vst.msk [vmem:[%s226 + $0x1b8] sm:$0xf] %vm2401, %v2255
      %2513 = vst.msk [vmem:[%s226 + $0x1bc] sm:$0xf] %vm2401, %v2256
      %2514 = vst.msk [vmem:[%s226 + $0x1c0] sm:$0xf] %vm2401, %v2257
      %2515 = vst.msk [vmem:[%s226 + $0x1c4] sm:$0xf] %vm2401, %v2258
      %2516 = vst.msk [vmem:[%s226 + $0x1c8] sm:$0xf] %vm2401, %v2259
      %2517 = vst.msk [vmem:[%s226 + $0x1cc] sm:$0xf] %vm2401, %v2260
      %2518 = vst.msk [vmem:[%s226 + $0x1d0] sm:$0xf] %vm2401, %v2261
      %2519 = vst.msk [vmem:[%s226 + $0x1d4] sm:$0xf] %vm2401, %v2262
      %2520 = vst.msk [vmem:[%s226 + $0x1d8] sm:$0xf] %vm2401, %v2263
      %2521 = vst.msk [vmem:[%s226 + $0x1dc] sm:$0xf] %vm2401, %v2264
      %2522 = vst.msk [vmem:[%s226 + $0x1e0] sm:$0xf] %vm2401, %v2265
      %2523 = vst.msk [vmem:[%s226 + $0x1e4] sm:$0xf] %vm2401, %v2266
      %2524 = vst.msk [vmem:[%s226 + $0x1e8] sm:$0xf] %vm2401, %v2267
      %2525 = vst.msk [vmem:[%s226 + $0x1ec] sm:$0xf] %vm2401, %v2268
      %2526 = vst.msk [vmem:[%s226 + $0x1f0] sm:$0xf] %vm2401, %v2269
      %2527 = vst.msk [vmem:[%s226 + $0x1f4] sm:$0xf] %vm2401, %v2270
      %2528 = vst.msk [vmem:[%s226 + $0x1f8] sm:$0xf] %vm2401, %v2271
      %2529 = vst.msk [vmem:[%s226 + $0x1fc] sm:$0xf] %vm2401, %v2272
      %s2530 = smul.u32 128, %s18
      %p2531 = scmp.lt.s32.totalorder %s2530, 255
      %s2532 = scalar_select %p2531, %s2530, 255
      %p2533 = scmp.lt.s32.totalorder %s19, 0
      %s2534 = scalar_select %p2533, %s19, 0
      %s2535 = sadd.s32 %s2534, %s2532
      %s2536 = smul.addr %s2535, 4
      %s2537 = scalar_lea.vmem %s3, %s2536
      // Predicated region
      $region33: #{tpu_custom_call.1} parent=31 // pred_check
        %p2538 = pneg %p124
      $region34: #{tpu_custom_call.1} parent=31 // pred_check_branch
        %2540 = sbr.rel (%p2538) target = $region36
      $region35: #{tpu_custom_call.1} parent=31 // pred_region
        %s2541 = smul.u32 128, %s18
      $region36: #{tpu_custom_call.1} parent=31 // pred_fallthru
        _
    $region32: #{tpu_custom_call.1} parent=5 // pred_fallthru
      _
    %p2542 = scmp.le.s32.totalorder 2, %s9
    // Predicated region
    $region37: #{tpu_custom_call.1} parent=5 // pred_check
      %p2543 = pneg %p2542
    $region38: #{tpu_custom_call.1} parent=5 // pred_check_branch
      %2545 = sbr.rel (%p2543) target = $region40
    $region39: #{tpu_custom_call.1} parent=5 // pred_region
      %s2546 = ssub.s32 %s9, 2
      // Predicated region
      $region41: #{tpu_custom_call.1} parent=39 // pred_check
        %p2547 = pneg %p130
      $region42: #{tpu_custom_call.1} parent=39 // pred_check_branch
        %2549 = sbr.rel (%p2547) target = $region44
      $region43: #{tpu_custom_call.1} parent=39 // pred_region
        %s2550 = smul.u32 128, %s20
        %p2551 = scmp.lt.s32.totalorder %s2550, 255
        %s2552 = scalar_select %p2551, %s2550, 255
        %p2553 = scmp.lt.s32.totalorder %s21, 0
        %s2554 = scalar_select %p2553, %s21, 0
        %s2555 = sadd.s32 %s2554, %s2552
        %s2556 = smul.addr %s2555, 4
        %s2557 = scalar_lea.vmem %s3, %s2556
      $region44: #{tpu_custom_call.1} parent=39 // pred_fallthru
        _
    $region40: #{tpu_custom_call.1} parent=5 // pred_fallthru
      _
  $region6: #{tpu_custom_call.1} parent=0 // loop_footer
    %s13 = sadd.s32 1, %s9
  $region7: #{tpu_custom_call.1} parent=0 // loop_footer_branch
    %8 = sbr.rel target = $region3
  $region8: #{tpu_custom_call.1} parent=0 // loop_exit
    _

</llo_original>
